<compile_context>
chip_gen: v6e
topology: v6e:2x2x1
jax: 0.10.0
libtpu: 0.0.40
codegen_flags: <defaults>
</compile_context>

<pallas_src>
import functools
import math

import jax
import jax.numpy as jnp
from jax.experimental import pallas as pl
from jax.experimental.pallas import tpu as pltpu


# ------------------------------ Pallas kernel -------------------------------

def _fused_attention_kernel(x_ref, wqkv_ref, bqkv_ref, wproj_ref, bproj_ref,
                            o_ref, *, n_heads):
    x = x_ref[0].astype(jnp.bfloat16)              # (N, C)  bf16 (single cast)
    wqkv = wqkv_ref[...]                           # (C, 3C) bf16, q-cols scaled
    bqkv = bqkv_ref[...]                           # (1, 3C) f32,  q-cols scaled
    wproj = wproj_ref[...]                         # (C, C)  bf16
    bproj = bproj_ref[...]                         # (1, C)  f32

    N, C = x.shape
    hd = C // n_heads

    # qkv projection: bf16 operands on MXU, f32 accumulation, f32 bias add.
    qkv_f32 = jnp.dot(x, wqkv, preferred_element_type=jnp.float32) + bqkv
    qkv = qkv_f32.astype(jnp.bfloat16)             # one cast; sliced per head

    # out = sum_h [softmax(q_h k_h^T) v_h] @ Wproj[h*hd:(h+1)*hd, :]
    acc = jnp.zeros((N, C), jnp.float32)
    for h in range(n_heads):                       # static unroll, small n_heads
        q = qkv[:, h * hd:(h + 1) * hd]                     # scale pre-folded
        k = qkv[:, C + h * hd:C + (h + 1) * hd]
        v = qkv[:, 2 * C + h * hd:2 * C + (h + 1) * hd]

        s = jnp.dot(q, k.T, preferred_element_type=jnp.float32)   # (N, N) f32
        m = jnp.max(s, axis=-1, keepdims=True)
        p = jnp.exp(s - m)
        l = jnp.sum(p, axis=-1, keepdims=True)
        o_h = jnp.dot(p.astype(jnp.bfloat16), v,
                      preferred_element_type=jnp.float32)          # (N, hd)
        o_h = o_h * pl.reciprocal(l, approx=True)

        acc = acc + jnp.dot(o_h.astype(jnp.bfloat16),
                            wproj[h * hd:(h + 1) * hd, :],
                            preferred_element_type=jnp.float32)

    o_ref[0] = (acc + bproj).astype(o_ref.dtype)


# ------------------------------ wrapper --------------------------------------

def attention_forward(x, w_qkv, b_qkv, w_proj, b_proj, *, n_heads):
    B, N, C = x.shape
    assert C % n_heads == 0
    hd = C // n_heads
    scale = hd ** (-0.5)

    # Fold the softmax scale into the q-columns of the qkv weight/bias and
    # pre-cast the weights to bf16 once (halves weight bytes DMA'd, removes
    # every in-kernel scale multiply).  Biases / softmax math stay f32.
    col_scale = jnp.concatenate(
        [jnp.full((C,), scale, w_qkv.dtype), jnp.ones((2 * C,), w_qkv.dtype)])
    w_qkv_bf = (w_qkv * col_scale).astype(jnp.bfloat16)
    b_qkv_s = b_qkv * col_scale
    w_proj_bf = w_proj.astype(jnp.bfloat16)

    kernel = functools.partial(_fused_attention_kernel, n_heads=n_heads)
    return pl.pallas_call(
        kernel,
        grid=(B,),
        in_specs=[
            pl.BlockSpec((1, N, C), lambda b: (b, 0, 0)),      # x
            pl.BlockSpec((C, 3 * C), lambda b: (0, 0)),        # W_qkv (bf16)
            pl.BlockSpec((1, 3 * C), lambda b: (0, 0)),        # b_qkv (f32)
            pl.BlockSpec((C, C), lambda b: (0, 0)),            # W_proj (bf16)
            pl.BlockSpec((1, C), lambda b: (0, 0)),            # b_proj (f32)
        ],
        out_specs=pl.BlockSpec((1, N, C), lambda b: (b, 0, 0)),
        out_shape=jax.ShapeDtypeStruct((B, N, C), x.dtype),
        compiler_params=pltpu.CompilerParams(
            dimension_semantics=("parallel",)),
    )(x, w_qkv_bf, b_qkv_s, w_proj_bf, b_proj)


# -------------------------- pure-JAX reference -------------------------------

def attention_ref(x, w_qkv, b_qkv, w_proj, b_proj, n_heads):
    B, N, C = x.shape
    hd = C // n_heads
    qkv = x @ w_qkv + b_qkv                                    # (B, N, 3C)
    qkv = qkv.reshape(B, N, 3, n_heads, hd)
    qkv = jnp.transpose(qkv, (2, 0, 3, 1, 4))                  # (3, B, H, N, hd)
    q, k, v = qkv[0], qkv[1], qkv[2]
    s = jnp.einsum('bhqd,bhkd->bhqk', q, k) * (hd ** (-0.5))
    p = jax.nn.softmax(s, axis=-1)
    o = jnp.einsum('bhqk,bhkd->bhqd', p, v)
    o = jnp.transpose(o, (0, 2, 1, 3)).reshape(B, N, C)
    return o @ w_proj + b_proj


# ----------------------------------- main ------------------------------------

if __name__ == "__main__":
    B, N, DIM, HEADS = 2, 64, 96, 4          # head_dim = 24

    key = jax.random.PRNGKey(0)
    k1, k2, k3, k4, k5 = jax.random.split(key, 5)
    x = jax.random.normal(k1, (B, N, DIM), jnp.float32)

    s_in = 1.0 / math.sqrt(DIM)              # nn.Linear-style uniform init
    w_qkv = jax.random.uniform(k2, (DIM, 3 * DIM), jnp.float32, -s_in, s_in)
    b_qkv = jax.random.uniform(k3, (1, 3 * DIM), jnp.float32, -s_in, s_in)
    w_proj = jax.random.uniform(k4, (DIM, DIM), jnp.float32, -s_in, s_in)
    b_proj = jax.random.uniform(k5, (1, DIM), jnp.float32, -s_in, s_in)

    fwd = jax.jit(functools.partial(attention_forward, n_heads=HEADS))
    out = fwd(x, w_qkv, b_qkv, w_proj, b_proj)
    jax.block_until_ready(out)
    assert out.shape == (B, N, DIM)

    ref = attention_ref(x, w_qkv, b_qkv, w_proj, b_proj, HEADS)
    max_err = float(jnp.max(jnp.abs(out - ref)))
    assert max_err < 5e-2, f"max abs err {max_err}"

    print("KERNEL_OK")
</pallas_src>

<mosaic_0001>
module attributes {stable_mosaic.version = 11 : i64} {
  func.func @_fused_attention_kernel(%arg0: i32, %arg1: memref<1x64x96xf32, #tpu.memory_space<vmem>>, %arg2: memref<96x288xbf16, #tpu.memory_space<vmem>>, %arg3: memref<1x288xf32, #tpu.memory_space<vmem>>, %arg4: memref<96x96xbf16, #tpu.memory_space<vmem>>, %arg5: memref<1x96xf32, #tpu.memory_space<vmem>>, %arg6: memref<1x64x96xf32, #tpu.memory_space<vmem>>) attributes {dimension_semantics = [#tpu.dimension_semantics<parallel>], iteration_bounds = array<i64: 2>, scalar_prefetch = 0 : i64, scratch_operands = 0 : i64, tpu.core_type = #tpu.core_type<tc>, window_params = [{transform_indices = @transform_0, window_bounds = array<i64: 1, 64, 96>}, {pipeline_mode = #tpu.pipeline_mode<synchronous>, transform_indices = @transform_1, window_bounds = array<i64: 96, 288>}, {pipeline_mode = #tpu.pipeline_mode<synchronous>, transform_indices = @transform_2, window_bounds = array<i64: 1, 288>}, {pipeline_mode = #tpu.pipeline_mode<synchronous>, transform_indices = @transform_3, window_bounds = array<i64: 96, 96>}, {pipeline_mode = #tpu.pipeline_mode<synchronous>, transform_indices = @transform_4, window_bounds = array<i64: 1, 96>}, {transform_indices = @transform_5, window_bounds = array<i64: 1, 64, 96>}]} {
    %c0 = arith.constant 0 : index
    %c0_0 = arith.constant 0 : index
    %c0_1 = arith.constant 0 : index
    %0 = vector.load %arg1[%c0, %c0_0, %c0_1] : memref<1x64x96xf32, #tpu.memory_space<vmem>>, vector<1x64x96xf32>
    %1 = vector.shape_cast %0 : vector<1x64x96xf32> to vector<64x96xf32>
    %2 = arith.truncf %1 : vector<64x96xf32> to vector<64x96xbf16>
    %c0_2 = arith.constant 0 : index
    %c0_3 = arith.constant 0 : index
    %3 = vector.load %arg2[%c0_2, %c0_3] : memref<96x288xbf16, #tpu.memory_space<vmem>>, vector<96x288xbf16>
    %c0_4 = arith.constant 0 : index
    %c0_5 = arith.constant 0 : index
    %4 = vector.load %arg3[%c0_4, %c0_5] : memref<1x288xf32, #tpu.memory_space<vmem>>, vector<1x288xf32>
    %c0_6 = arith.constant 0 : index
    %c0_7 = arith.constant 0 : index
    %5 = vector.load %arg4[%c0_6, %c0_7] : memref<96x96xbf16, #tpu.memory_space<vmem>>, vector<96x96xbf16>
    %c0_8 = arith.constant 0 : index
    %c0_9 = arith.constant 0 : index
    %6 = vector.load %arg5[%c0_8, %c0_9] : memref<1x96xf32, #tpu.memory_space<vmem>>, vector<1x96xf32>
    %cst = arith.constant dense<0.000000e+00> : vector<64x288xf32>
    %7 = tpu.matmul %2, %3, %cst {dimension_numbers = #tpu.dot_dimension_numbers<[1], [0], [0], [1], [0, 0, 1, 1], [], []>} : vector<64x96xbf16>, vector<96x288xbf16>, vector<64x288xf32> -> vector<64x288xf32>
    %8 = vector.broadcast %4 : vector<1x288xf32> to vector<64x288xf32>
    %9 = arith.addf %7, %8 : vector<64x288xf32>
    %10 = arith.truncf %9 : vector<64x288xf32> to vector<64x288xbf16>
    %cst_10 = arith.constant 0.000000e+00 : f32
    %11 = vector.broadcast %cst_10 : f32 to vector<64x96xf32>
    %12 = vector.extract_strided_slice %10 {offsets = [0, 0], sizes = [64, 24], strides = [1, 1]} : vector<64x288xbf16> to vector<64x24xbf16>
    %13 = vector.extract_strided_slice %10 {offsets = [0, 96], sizes = [64, 24], strides = [1, 1]} : vector<64x288xbf16> to vector<64x24xbf16>
    %14 = vector.extract_strided_slice %10 {offsets = [0, 192], sizes = [64, 24], strides = [1, 1]} : vector<64x288xbf16> to vector<64x24xbf16>
    %15 = tpu.transpose %13, [1, 0] : vector<64x24xbf16> -> vector<24x64xbf16>
    %cst_11 = arith.constant dense<0.000000e+00> : vector<64x64xf32>
    %16 = tpu.matmul %12, %15, %cst_11 {dimension_numbers = #tpu.dot_dimension_numbers<[1], [0], [0], [1], [0, 0, 1, 1], [], []>} : vector<64x24xbf16>, vector<24x64xbf16>, vector<64x64xf32> -> vector<64x64xf32>
    %cst_12 = arith.constant dense<0xFF800000> : vector<64xf32>
    %17 = vector.multi_reduction <maximumf>, %16, %cst_12 [1] : vector<64x64xf32> to vector<64xf32>
    %18 = vector.shape_cast %17 : vector<64xf32> to vector<64x1xf32>
    %19 = vector.broadcast %18 : vector<64x1xf32> to vector<64x64xf32>
    %20 = arith.subf %16, %19 : vector<64x64xf32>
    %21 = math.exp %20 : vector<64x64xf32>
    %cst_13 = arith.constant dense<0.000000e+00> : vector<64xf32>
    %22 = vector.multi_reduction <add>, %21, %cst_13 [1] : vector<64x64xf32> to vector<64xf32>
    %23 = vector.shape_cast %22 : vector<64xf32> to vector<64x1xf32>
    %24 = arith.truncf %21 : vector<64x64xf32> to vector<64x64xbf16>
    %cst_14 = arith.constant dense<0.000000e+00> : vector<64x24xf32>
    %25 = tpu.matmul %24, %14, %cst_14 {dimension_numbers = #tpu.dot_dimension_numbers<[1], [0], [0], [1], [0, 0, 1, 1], [], []>} : vector<64x64xbf16>, vector<64x24xbf16>, vector<64x24xf32> -> vector<64x24xf32>
    %26 = tpu.reciprocal %23 {approx = true} : vector<64x1xf32> -> vector<64x1xf32>
    %27 = vector.broadcast %26 : vector<64x1xf32> to vector<64x24xf32>
    %28 = arith.mulf %25, %27 : vector<64x24xf32>
    %29 = arith.truncf %28 : vector<64x24xf32> to vector<64x24xbf16>
    %30 = vector.extract_strided_slice %5 {offsets = [0, 0], sizes = [24, 96], strides = [1, 1]} : vector<96x96xbf16> to vector<24x96xbf16>
    %cst_15 = arith.constant dense<0.000000e+00> : vector<64x96xf32>
    %31 = tpu.matmul %29, %30, %cst_15 {dimension_numbers = #tpu.dot_dimension_numbers<[1], [0], [0], [1], [0, 0, 1, 1], [], []>} : vector<64x24xbf16>, vector<24x96xbf16>, vector<64x96xf32> -> vector<64x96xf32>
    %32 = arith.addf %11, %31 : vector<64x96xf32>
    %33 = vector.extract_strided_slice %10 {offsets = [0, 24], sizes = [64, 24], strides = [1, 1]} : vector<64x288xbf16> to vector<64x24xbf16>
    %34 = vector.extract_strided_slice %10 {offsets = [0, 120], sizes = [64, 24], strides = [1, 1]} : vector<64x288xbf16> to vector<64x24xbf16>
    %35 = vector.extract_strided_slice %10 {offsets = [0, 216], sizes = [64, 24], strides = [1, 1]} : vector<64x288xbf16> to vector<64x24xbf16>
    %36 = tpu.transpose %34, [1, 0] : vector<64x24xbf16> -> vector<24x64xbf16>
    %cst_16 = arith.constant dense<0.000000e+00> : vector<64x64xf32>
    %37 = tpu.matmul %33, %36, %cst_16 {dimension_numbers = #tpu.dot_dimension_numbers<[1], [0], [0], [1], [0, 0, 1, 1], [], []>} : vector<64x24xbf16>, vector<24x64xbf16>, vector<64x64xf32> -> vector<64x64xf32>
    %cst_17 = arith.constant dense<0xFF800000> : vector<64xf32>
    %38 = vector.multi_reduction <maximumf>, %37, %cst_17 [1] : vector<64x64xf32> to vector<64xf32>
    %39 = vector.shape_cast %38 : vector<64xf32> to vector<64x1xf32>
    %40 = vector.broadcast %39 : vector<64x1xf32> to vector<64x64xf32>
    %41 = arith.subf %37, %40 : vector<64x64xf32>
    %42 = math.exp %41 : vector<64x64xf32>
    %cst_18 = arith.constant dense<0.000000e+00> : vector<64xf32>
    %43 = vector.multi_reduction <add>, %42, %cst_18 [1] : vector<64x64xf32> to vector<64xf32>
    %44 = vector.shape_cast %43 : vector<64xf32> to vector<64x1xf32>
    %45 = arith.truncf %42 : vector<64x64xf32> to vector<64x64xbf16>
    %cst_19 = arith.constant dense<0.000000e+00> : vector<64x24xf32>
    %46 = tpu.matmul %45, %35, %cst_19 {dimension_numbers = #tpu.dot_dimension_numbers<[1], [0], [0], [1], [0, 0, 1, 1], [], []>} : vector<64x64xbf16>, vector<64x24xbf16>, vector<64x24xf32> -> vector<64x24xf32>
    %47 = tpu.reciprocal %44 {approx = true} : vector<64x1xf32> -> vector<64x1xf32>
    %48 = vector.broadcast %47 : vector<64x1xf32> to vector<64x24xf32>
    %49 = arith.mulf %46, %48 : vector<64x24xf32>
    %50 = arith.truncf %49 : vector<64x24xf32> to vector<64x24xbf16>
    %51 = vector.extract_strided_slice %5 {offsets = [24, 0], sizes = [24, 96], strides = [1, 1]} : vector<96x96xbf16> to vector<24x96xbf16>
    %cst_20 = arith.constant dense<0.000000e+00> : vector<64x96xf32>
    %52 = tpu.matmul %50, %51, %cst_20 {dimension_numbers = #tpu.dot_dimension_numbers<[1], [0], [0], [1], [0, 0, 1, 1], [], []>} : vector<64x24xbf16>, vector<24x96xbf16>, vector<64x96xf32> -> vector<64x96xf32>
    %53 = arith.addf %32, %52 : vector<64x96xf32>
    %54 = vector.extract_strided_slice %10 {offsets = [0, 48], sizes = [64, 24], strides = [1, 1]} : vector<64x288xbf16> to vector<64x24xbf16>
    %55 = vector.extract_strided_slice %10 {offsets = [0, 144], sizes = [64, 24], strides = [1, 1]} : vector<64x288xbf16> to vector<64x24xbf16>
    %56 = vector.extract_strided_slice %10 {offsets = [0, 240], sizes = [64, 24], strides = [1, 1]} : vector<64x288xbf16> to vector<64x24xbf16>
    %57 = tpu.transpose %55, [1, 0] : vector<64x24xbf16> -> vector<24x64xbf16>
    %cst_21 = arith.constant dense<0.000000e+00> : vector<64x64xf32>
    %58 = tpu.matmul %54, %57, %cst_21 {dimension_numbers = #tpu.dot_dimension_numbers<[1], [0], [0], [1], [0, 0, 1, 1], [], []>} : vector<64x24xbf16>, vector<24x64xbf16>, vector<64x64xf32> -> vector<64x64xf32>
    %cst_22 = arith.constant dense<0xFF800000> : vector<64xf32>
    %59 = vector.multi_reduction <maximumf>, %58, %cst_22 [1] : vector<64x64xf32> to vector<64xf32>
    %60 = vector.shape_cast %59 : vector<64xf32> to vector<64x1xf32>
    %61 = vector.broadcast %60 : vector<64x1xf32> to vector<64x64xf32>
    %62 = arith.subf %58, %61 : vector<64x64xf32>
    %63 = math.exp %62 : vector<64x64xf32>
    %cst_23 = arith.constant dense<0.000000e+00> : vector<64xf32>
    %64 = vector.multi_reduction <add>, %63, %cst_23 [1] : vector<64x64xf32> to vector<64xf32>
    %65 = vector.shape_cast %64 : vector<64xf32> to vector<64x1xf32>
    %66 = arith.truncf %63 : vector<64x64xf32> to vector<64x64xbf16>
    %cst_24 = arith.constant dense<0.000000e+00> : vector<64x24xf32>
    %67 = tpu.matmul %66, %56, %cst_24 {dimension_numbers = #tpu.dot_dimension_numbers<[1], [0], [0], [1], [0, 0, 1, 1], [], []>} : vector<64x64xbf16>, vector<64x24xbf16>, vector<64x24xf32> -> vector<64x24xf32>
    %68 = tpu.reciprocal %65 {approx = true} : vector<64x1xf32> -> vector<64x1xf32>
    %69 = vector.broadcast %68 : vector<64x1xf32> to vector<64x24xf32>
    %70 = arith.mulf %67, %69 : vector<64x24xf32>
    %71 = arith.truncf %70 : vector<64x24xf32> to vector<64x24xbf16>
    %72 = vector.extract_strided_slice %5 {offsets = [48, 0], sizes = [24, 96], strides = [1, 1]} : vector<96x96xbf16> to vector<24x96xbf16>
    %cst_25 = arith.constant dense<0.000000e+00> : vector<64x96xf32>
    %73 = tpu.matmul %71, %72, %cst_25 {dimension_numbers = #tpu.dot_dimension_numbers<[1], [0], [0], [1], [0, 0, 1, 1], [], []>} : vector<64x24xbf16>, vector<24x96xbf16>, vector<64x96xf32> -> vector<64x96xf32>
    %74 = arith.addf %53, %73 : vector<64x96xf32>
    %75 = vector.extract_strided_slice %10 {offsets = [0, 72], sizes = [64, 24], strides = [1, 1]} : vector<64x288xbf16> to vector<64x24xbf16>
    %76 = vector.extract_strided_slice %10 {offsets = [0, 168], sizes = [64, 24], strides = [1, 1]} : vector<64x288xbf16> to vector<64x24xbf16>
    %77 = vector.extract_strided_slice %10 {offsets = [0, 264], sizes = [64, 24], strides = [1, 1]} : vector<64x288xbf16> to vector<64x24xbf16>
    %78 = tpu.transpose %76, [1, 0] : vector<64x24xbf16> -> vector<24x64xbf16>
    %cst_26 = arith.constant dense<0.000000e+00> : vector<64x64xf32>
    %79 = tpu.matmul %75, %78, %cst_26 {dimension_numbers = #tpu.dot_dimension_numbers<[1], [0], [0], [1], [0, 0, 1, 1], [], []>} : vector<64x24xbf16>, vector<24x64xbf16>, vector<64x64xf32> -> vector<64x64xf32>
    %cst_27 = arith.constant dense<0xFF800000> : vector<64xf32>
    %80 = vector.multi_reduction <maximumf>, %79, %cst_27 [1] : vector<64x64xf32> to vector<64xf32>
    %81 = vector.shape_cast %80 : vector<64xf32> to vector<64x1xf32>
    %82 = vector.broadcast %81 : vector<64x1xf32> to vector<64x64xf32>
    %83 = arith.subf %79, %82 : vector<64x64xf32>
    %84 = math.exp %83 : vector<64x64xf32>
    %cst_28 = arith.constant dense<0.000000e+00> : vector<64xf32>
    %85 = vector.multi_reduction <add>, %84, %cst_28 [1] : vector<64x64xf32> to vector<64xf32>
    %86 = vector.shape_cast %85 : vector<64xf32> to vector<64x1xf32>
    %87 = arith.truncf %84 : vector<64x64xf32> to vector<64x64xbf16>
    %cst_29 = arith.constant dense<0.000000e+00> : vector<64x24xf32>
    %88 = tpu.matmul %87, %77, %cst_29 {dimension_numbers = #tpu.dot_dimension_numbers<[1], [0], [0], [1], [0, 0, 1, 1], [], []>} : vector<64x64xbf16>, vector<64x24xbf16>, vector<64x24xf32> -> vector<64x24xf32>
    %89 = tpu.reciprocal %86 {approx = true} : vector<64x1xf32> -> vector<64x1xf32>
    %90 = vector.broadcast %89 : vector<64x1xf32> to vector<64x24xf32>
    %91 = arith.mulf %88, %90 : vector<64x24xf32>
    %92 = arith.truncf %91 : vector<64x24xf32> to vector<64x24xbf16>
    %93 = vector.extract_strided_slice %5 {offsets = [72, 0], sizes = [24, 96], strides = [1, 1]} : vector<96x96xbf16> to vector<24x96xbf16>
    %cst_30 = arith.constant dense<0.000000e+00> : vector<64x96xf32>
    %94 = tpu.matmul %92, %93, %cst_30 {dimension_numbers = #tpu.dot_dimension_numbers<[1], [0], [0], [1], [0, 0, 1, 1], [], []>} : vector<64x24xbf16>, vector<24x96xbf16>, vector<64x96xf32> -> vector<64x96xf32>
    %95 = arith.addf %74, %94 : vector<64x96xf32>
    %96 = vector.broadcast %6 : vector<1x96xf32> to vector<64x96xf32>
    %97 = arith.addf %95, %96 : vector<64x96xf32>
    %c0_31 = arith.constant 0 : index
    %c0_32 = arith.constant 0 : index
    %c0_33 = arith.constant 0 : index
    %98 = vector.load %arg6[%c0_31, %c0_32, %c0_33] : memref<1x64x96xf32, #tpu.memory_space<vmem>>, vector<1x64x96xf32>
    %99 = vector.shape_cast %98 : vector<1x64x96xf32> to vector<64x96xf32>
    %100 = vector.shape_cast %97 : vector<64x96xf32> to vector<1x64x96xf32>
    tpu.vector_store %arg6[%c0_31, %c0_32, %c0_33], %100 {strides = array<i32>} : memref<1x64x96xf32, #tpu.memory_space<vmem>>, vector<1x64x96xf32>,
    return
  }
  func.func @transform_0(%arg0: i32) -> (i32, i32, i32) {
    %c0_i32 = arith.constant 0 : i32
    %c0_i32_0 = arith.constant 0 : i32
    %c0_i32_1 = arith.constant 0 : i32
    return %arg0, %c0_i32, %c0_i32_0 : i32, i32, i32
  }
  func.func @transform_1(%arg0: i32) -> (i32, i32) {
    %c0_i32 = arith.constant 0 : i32
    %c0_i32_0 = arith.constant 0 : i32
    %c0_i32_1 = arith.constant 0 : i32
    return %c0_i32, %c0_i32_0 : i32, i32
  }
  func.func @transform_2(%arg0: i32) -> (i32, i32) {
    %c0_i32 = arith.constant 0 : i32
    %c0_i32_0 = arith.constant 0 : i32
    %c0_i32_1 = arith.constant 0 : i32
    return %c0_i32, %c0_i32_0 : i32, i32
  }
  func.func @transform_3(%arg0: i32) -> (i32, i32) {
    %c0_i32 = arith.constant 0 : i32
    %c0_i32_0 = arith.constant 0 : i32
    %c0_i32_1 = arith.constant 0 : i32
    return %c0_i32, %c0_i32_0 : i32, i32
  }
  func.func @transform_4(%arg0: i32) -> (i32, i32) {
    %c0_i32 = arith.constant 0 : i32
    %c0_i32_0 = arith.constant 0 : i32
    %c0_i32_1 = arith.constant 0 : i32
    return %c0_i32, %c0_i32_0 : i32, i32
  }
  func.func @transform_5(%arg0: i32) -> (i32, i32, i32) {
    %c0_i32 = arith.constant 0 : i32
    %c0_i32_0 = arith.constant 0 : i32
    %c0_i32_1 = arith.constant 0 : i32
    return %arg0, %c0_i32, %c0_i32_0 : i32, i32, i32
  }
}

</mosaic_0001>

<llo_original>
// kernel: mul.9
$region0: #{mul.9}
  #allocation0 [shape = 's32[1]{0}', space=sflag, size = 0x4, scoped, tag = 'scoped memory for mul.9']
  %s0 = inlined_call_operand.vmem [shape: f32[1,288], index: 0, kind: input, shape index: {}]
  %s1 = inlined_call_operand.vmem [shape: f32[1,288], index: 1, kind: input, shape index: {}]
  %s2 = inlined_call_operand.vmem [shape: f32[1,288], index: 2, kind: output, shape index: {}]
  %v3 = vld [vmem:[%s0] sm:$0x1]
  %v4 = vld [vmem:[%s1] sm:$0x1]
  %5 = xla_tuple %v3, %v4
  %6 = xla_tuple %5
  %v7 = vmul.f32 %v3, %v4
  %8 = xla_tuple %v7
  %9 = vst [vmem:[%s2] sm:$0x1] %v7
  %s10 = scalar_lea.vmem %s0, 1
  %v11 = vld [vmem:[%s10] sm:$0x1]
  %s12 = scalar_lea.vmem %s1, 1
  %v13 = vld [vmem:[%s12] sm:$0x1]
  %14 = xla_tuple %v11, %v13
  %15 = xla_tuple %14
  %v16 = vmul.f32 %v11, %v13
  %17 = xla_tuple %v16
  %s18 = scalar_lea.vmem %s2, 1
  %19 = vst [vmem:[%s18] sm:$0x1] %v16
  %s20 = scalar_lea.vmem %s0, 2
  %v21 = vld [vmem:[%s20] sm:$0x1]
  %s22 = scalar_lea.vmem %s1, 2
  %v23 = vld [vmem:[%s22] sm:$0x1]
  %24 = xla_tuple %v21, %v23
  %25 = xla_tuple %24
  %v26 = vmul.f32 %v21, %v23
  %27 = xla_tuple %v26
  %s28 = scalar_lea.vmem %s2, 2
  %29 = vst [vmem:[%s28] sm:$0x1] %v26

// kernel: attention_forward.1
$region0: #{attention_forward.1}
  #allocation0 [shape = 'u32[]', space=smem, size = 0x4, offset = 0x4, fixed_abs, tag = 'smem constant byte address 0x4 - core index']
  #allocation1 [shape = 'u32[144,128]{1,0:T(1,128)}', space=vmem, size = 0x12000, scoped, tag = 'internal scratch']
  %s0 = inlined_call_operand.vmem [shape: f32[2,64,96], index: 0, kind: input, shape index: {}]
  %s1 = inlined_call_operand.vmem [shape: bf16[96,288], index: 1, kind: input, shape index: {}]
  %s2 = inlined_call_operand.vmem [shape: f32[1,288], index: 2, kind: input, shape index: {}]
  %s3 = inlined_call_operand.vmem [shape: bf16[96,96], index: 3, kind: input, shape index: {}]
  %s4 = inlined_call_operand.vmem [shape: f32[1,96], index: 4, kind: input, shape index: {}]
  %s5 = inlined_call_operand.hbm [shape: f32[2,64,96], index: 5, kind: output, shape index: {}]
  %s6 = sld [smem:[#allocation0]]
  $region53: #{attention_forward.1} parent=0
    _
  %s8 = ssub.s32 1, %s6
  %s9 = scalar_select 0, %s8, %s6
  $region1: #{attention_forward.1} parent=0
    #allocation2 [shape = 'u8[65536]{0}', space=vmem, size = 0x10000, scoped, tag = 'output window, operand 0']
    #allocation3 [shape = 's32[2]{0}', space=sflag, size = 0x8, scoped, tag = 'scoped memory for attention_forward.1']
    %10 = vsyncpa [#allocation3], 0
    %s11 = scalar_lea.sflag [#allocation3], 1
    %12 = vsyncpa %s11, 0
    loop: start=0, step=1, limit=4
    $region2: #{attention_forward.1} parent=1 // loop_pre_header
      _
    $region3: #{attention_forward.1} parent=1 // loop_header
      %s14 = sphi 0, %s18
      %p15 = scmp.ge.s32.totalorder %s14, 4
      %s24 = sphi 0, %s26
      %s27 = sphi 0, %s24
      %s28 = sphi 0, %s27
      %s44 = sphi 0, %s28
      %s48 = sphi 0, %s48
      %s50 = sphi 0, %s48
      %s51 = sphi 0, %s50
      %s65 = sphi 0, %s51
      %s69 = sphi 0, %s69
      %s71 = sphi 0, %s69
      %s72 = sphi 0, %s71
      %s86 = sphi 0, %s72
      %s90 = sphi 0, %s90
      %s92 = sphi 0, %s90
      %s93 = sphi 0, %s92
      %s107 = sphi 0, %s93
      %s111 = sphi 0, %s111
      %s113 = sphi 0, %s111
      %s114 = sphi 0, %s113
      %s128 = sphi 0, %s114
      %s134 = sphi 0, %s136
      %s137 = sphi 0, %s134
      %s138 = sphi 0, %s137
      %s154 = sphi 0, %s138
    $region4: #{attention_forward.1} parent=1 // loop_header_branch
      %17 = sbr.rel (%p15) target = $region8
    $region5: #{attention_forward.1} parent=1 // loop_body
      %s19 = ssub.s32 %s14, 1
      %s20 = ssub.s32 %s14, 2
      %s21 = sadd.s32 %s14, 1
      %s22 = ssub.s32 %s14, %s21
      %p23 = scmp.eq.s32.totalorder %s22, 0
      %s25 = sadd.s32 %s24, 1
      %s26 = scalar_select %p23, %s24, %s25
      %p29 = pneg %p23
      %p30 = scmp.eq.s32.totalorder %s14, 1
      %p31 = por %p29, %p30
      %p32 = scmp.ne.s32.totalorder %s24, %s27
      %p33 = scmp.eq.s32.totalorder %s14, 0
      %p34 = por %p32, %p33
      %p35 = scmp.ne.s32.totalorder %s24, %s27
      %p36 = scmp.eq.s32.totalorder %s19, 1
      %p37 = por %p35, %p36
      %p38 = scmp.ne.s32.totalorder %s27, %s28
      %p39 = scmp.eq.s32.totalorder %s19, 0
      %p40 = por %p38, %p39
      %p41 = scmp.ne.s32.totalorder %s27, %s28
      %p42 = scmp.eq.s32.totalorder %s20, 1
      %p43 = por %p41, %p42
      %p45 = scmp.ne.s32.totalorder %s28, %s44
      %p46 = scmp.eq.s32.totalorder %s20, 0
      %p47 = por %p45, %p46
      %s49 = sadd.s32 %s48, 1
      %p52 = scmp.eq.s32.totalorder %s14, 1
      %p53 = scmp.ne.s32.totalorder %s48, %s50
      %p54 = scmp.eq.s32.totalorder %s14, 0
      %p55 = por %p53, %p54
      %p56 = scmp.ne.s32.totalorder %s48, %s50
      %p57 = scmp.eq.s32.totalorder %s19, 1
      %p58 = por %p56, %p57
      %p59 = scmp.ne.s32.totalorder %s50, %s51
      %p60 = scmp.eq.s32.totalorder %s19, 0
      %p61 = por %p59, %p60
      %p62 = scmp.ne.s32.totalorder %s50, %s51
      %p63 = scmp.eq.s32.totalorder %s20, 1
      %p64 = por %p62, %p63
      %p66 = scmp.ne.s32.totalorder %s51, %s65
      %p67 = scmp.eq.s32.totalorder %s20, 0
      %p68 = por %p66, %p67
      %s70 = sadd.s32 %s69, 1
      %p73 = scmp.eq.s32.totalorder %s14, 1
      %p74 = scmp.ne.s32.totalorder %s69, %s71
      %p75 = scmp.eq.s32.totalorder %s14, 0
      %p76 = por %p74, %p75
      %p77 = scmp.ne.s32.totalorder %s69, %s71
      %p78 = scmp.eq.s32.totalorder %s19, 1
      %p79 = por %p77, %p78
      %p80 = scmp.ne.s32.totalorder %s71, %s72
      %p81 = scmp.eq.s32.totalorder %s19, 0
      %p82 = por %p80, %p81
      %p83 = scmp.ne.s32.totalorder %s71, %s72
      %p84 = scmp.eq.s32.totalorder %s20, 1
      %p85 = por %p83, %p84
      %p87 = scmp.ne.s32.totalorder %s72, %s86
      %p88 = scmp.eq.s32.totalorder %s20, 0
      %p89 = por %p87, %p88
      %s91 = sadd.s32 %s90, 1
      %p94 = scmp.eq.s32.totalorder %s14, 1
      %p95 = scmp.ne.s32.totalorder %s90, %s92
      %p96 = scmp.eq.s32.totalorder %s14, 0
      %p97 = por %p95, %p96
      %p98 = scmp.ne.s32.totalorder %s90, %s92
      %p99 = scmp.eq.s32.totalorder %s19, 1
      %p100 = por %p98, %p99
      %p101 = scmp.ne.s32.totalorder %s92, %s93
      %p102 = scmp.eq.s32.totalorder %s19, 0
      %p103 = por %p101, %p102
      %p104 = scmp.ne.s32.totalorder %s92, %s93
      %p105 = scmp.eq.s32.totalorder %s20, 1
      %p106 = por %p104, %p105
      %p108 = scmp.ne.s32.totalorder %s93, %s107
      %p109 = scmp.eq.s32.totalorder %s20, 0
      %p110 = por %p108, %p109
      %s112 = sadd.s32 %s111, 1
      %p115 = scmp.eq.s32.totalorder %s14, 1
      %p116 = scmp.ne.s32.totalorder %s111, %s113
      %p117 = scmp.eq.s32.totalorder %s14, 0
      %p118 = por %p116, %p117
      %p119 = scmp.ne.s32.totalorder %s111, %s113
      %p120 = scmp.eq.s32.totalorder %s19, 1
      %p121 = por %p119, %p120
      %p122 = scmp.ne.s32.totalorder %s113, %s114
      %p123 = scmp.eq.s32.totalorder %s19, 0
      %p124 = por %p122, %p123
      %p125 = scmp.ne.s32.totalorder %s113, %s114
      %p126 = scmp.eq.s32.totalorder %s20, 1
      %p127 = por %p125, %p126
      %p129 = scmp.ne.s32.totalorder %s114, %s128
      %p130 = scmp.eq.s32.totalorder %s20, 0
      %p131 = por %p129, %p130
      %s132 = ssub.s32 %s14, %s21
      %p133 = scmp.eq.s32.totalorder %s132, 0
      %s135 = sadd.s32 %s134, 1
      %s136 = scalar_select %p133, %s134, %s135
      %p139 = pneg %p133
      %p140 = scmp.eq.s32.totalorder %s14, 1
      %p141 = por %p139, %p140
      %p142 = scmp.ne.s32.totalorder %s134, %s137
      %p143 = scmp.eq.s32.totalorder %s14, 0
      %p144 = por %p142, %p143
      %p145 = scmp.ne.s32.totalorder %s134, %s137
      %p146 = scmp.eq.s32.totalorder %s19, 1
      %p147 = por %p145, %p146
      %p148 = scmp.ne.s32.totalorder %s137, %s138
      %p149 = scmp.eq.s32.totalorder %s19, 0
      %p150 = por %p148, %p149
      %p151 = scmp.ne.s32.totalorder %s137, %s138
      %p152 = scmp.eq.s32.totalorder %s20, 1
      %p153 = por %p151, %p152
      %p155 = scmp.ne.s32.totalorder %s138, %s154
      %p156 = scmp.eq.s32.totalorder %s20, 0
      %p157 = por %p155, %p156
      %p158 = scmp.le.s32.totalorder 1, %s14
      %p159 = scmp.lt.s32.totalorder %s14, 3
      %p160 = pnand %p158, %p159
      %p161 = pneg %p160
      // Predicated region
      $region9: #{attention_forward.1} parent=5 // pred_check
        _
      $region10: #{attention_forward.1} parent=5 // pred_check_branch
        %163 = sbr.rel (%p160) target = $region12
      $region11: #{attention_forward.1} parent=5 // pred_region
        %s164 = ssub.s32 %s14, 1
        // Predicated region
        $region13: #{attention_forward.1} parent=11 // pred_check
          %p165 = pneg %p61
        $region14: #{attention_forward.1} parent=11 // pred_check_branch
          %167 = sbr.rel (%p165) target = $region16
        $region15: #{attention_forward.1} parent=11 // pred_region
          _
        $region16: #{attention_forward.1} parent=11 // pred_fallthru
          _
        // Predicated region
        $region17: #{attention_forward.1} parent=11 // pred_check
          %p168 = pneg %p82
        $region18: #{attention_forward.1} parent=11 // pred_check_branch
          %170 = sbr.rel (%p168) target = $region20
        $region19: #{attention_forward.1} parent=11 // pred_region
          _
        $region20: #{attention_forward.1} parent=11 // pred_fallthru
          _
        // Predicated region
        $region21: #{attention_forward.1} parent=11 // pred_check
          %p171 = pneg %p103
        $region22: #{attention_forward.1} parent=11 // pred_check_branch
          %173 = sbr.rel (%p171) target = $region24
        $region23: #{attention_forward.1} parent=11 // pred_region
          _
        $region24: #{attention_forward.1} parent=11 // pred_fallthru
          _
        // Predicated region
        $region25: #{attention_forward.1} parent=11 // pred_check
          %p174 = pneg %p124
        $region26: #{attention_forward.1} parent=11 // pred_check_branch
          %176 = sbr.rel (%p174) target = $region28
        $region27: #{attention_forward.1} parent=11 // pred_region
          _
        $region28: #{attention_forward.1} parent=11 // pred_fallthru
          _
      $region12: #{attention_forward.1} parent=5 // pred_fallthru
        _
      %p177 = scmp.lt.s32.totalorder %s14, 2
      // Predicated region
      $region29: #{attention_forward.1} parent=5 // pred_check
        %p178 = pneg %p177
      $region30: #{attention_forward.1} parent=5 // pred_check_branch
        %180 = sbr.rel (%p178) target = $region32
      $region31: #{attention_forward.1} parent=5 // pred_region
        // Predicated region
        $region33: #{attention_forward.1} parent=31 // pred_check
          %p181 = pneg %p34
        $region34: #{attention_forward.1} parent=31 // pred_check_branch
          %183 = sbr.rel (%p181) target = $region36
        $region35: #{attention_forward.1} parent=31 // pred_region
          %p184 = scmp.lt.s32.totalorder %s14, 1
          %s185 = scalar_select %p184, %s14, 1
          %s186 = smul.addr %s185, 8
          %s187 = smul.addr %s186, 8
          %s188 = scalar_lea.vmem %s0, %s187
        $region36: #{attention_forward.1} parent=31 // pred_fallthru
          _
      $region32: #{attention_forward.1} parent=5 // pred_fallthru
        _
      %p189 = scmp.le.s32.totalorder 1, %s14
      %p190 = scmp.lt.s32.totalorder %s14, 3
      %p191 = pnand %p189, %p190
      %p192 = pneg %p191
      // Predicated region
      $region37: #{attention_forward.1} parent=5 // pred_check
        _
      $region38: #{attention_forward.1} parent=5 // pred_check_branch
        %194 = sbr.rel (%p191) target = $region40
      $region39: #{attention_forward.1} parent=5 // pred_region
        %s195 = ssub.s32 %s14, 1
        %p196 = scmp.lt.s32.totalorder %s19, 1
        %s197 = scalar_select %p196, %s19, 1
        %s198 = smul.addr %s197, 8
        %s199 = smul.addr %s198, 8
        %s200 = scalar_lea.vmem %s0, %s199
        %p201 = pneg %p40
        %p202 = pneg %p37
        %p203 = pneg %p61
        %p204 = pneg %p58
        %p205 = pneg %p82
        %p206 = pneg %p79
        %p207 = pneg %p103
        %p208 = pneg %p100
        %p209 = pneg %p124
        %p210 = pneg %p121
        %p211 = pneg %p150
        %p212 = pneg %p147
        %s213 = sand.u32 %s137, 1
        %s214 = scalar_lea.sflag [#allocation3], %s213
        %s215 = sand.u32 %s137, 1
        %s216 = smul.addr %s215, 64
        %s217 = scalar_lea.vmem [#allocation2], %s216
        %p218 = scmp.lt.s32.totalorder %s19, 1
        %s219 = scalar_select %p218, %s19, 1
        %s220 = smul.addr %s219, 8
        %s221 = smul.addr %s220, 8
        %s222 = scalar_lea.vmem %s0, %s221
        %v224 = vld [vmem:[%s222] sm:$0xff]
        %v225 = vld [vmem:[%s222 + $0x8] sm:$0xff]
        %v226 = vld [vmem:[%s222 + $0x10] sm:$0xff]
        %v227 = vld [vmem:[%s222 + $0x18] sm:$0xff]
        %v228 = vld [vmem:[%s222 + $0x20] sm:$0xff]
        %v229 = vld [vmem:[%s222 + $0x28] sm:$0xff]
        %v230 = vld [vmem:[%s222 + $0x30] sm:$0xff]
        %v231 = vld [vmem:[%s222 + $0x38] sm:$0xff]
        %v232 = vpack.c.bf16 %v225, %v224
        %v233 = vpack.c.bf16 %v227, %v226
        %v234 = vpack.c.bf16 %v229, %v228
        %v235 = vpack.c.bf16 %v231, %v230
        %v236 = vld [vmem:[%s1] sm:$0xff]
        %v237 = vld [vmem:[%s1 + $0x8] sm:$0xf]
        %v238 = vld [vmem:[%s1 + $0xc] sm:$0xff]
        %v239 = vld [vmem:[%s1 + $0x14] sm:$0xf]
        %v240 = vld [vmem:[%s1 + $0x18] sm:$0xff]
        %v241 = vld [vmem:[%s1 + $0x20] sm:$0xf]
        %v242 = vld [vmem:[%s1 + $0x24] sm:$0xff]
        %v243 = vld [vmem:[%s1 + $0x2c] sm:$0xf]
        %v244 = vld [vmem:[%s1 + $0x30] sm:$0xff]
        %v245 = vld [vmem:[%s1 + $0x38] sm:$0xf]
        %v246 = vld [vmem:[%s1 + $0x3c] sm:$0xff]
        %v247 = vld [vmem:[%s1 + $0x44] sm:$0xf]
        %v248 = vld [vmem:[%s1 + $0x48] sm:$0xff]
        %v249 = vld [vmem:[%s1 + $0x50] sm:$0xf]
        %v250 = vld [vmem:[%s1 + $0x54] sm:$0xff]
        %v251 = vld [vmem:[%s1 + $0x5c] sm:$0xf]
        %v252 = vld [vmem:[%s1 + $0x60] sm:$0xff]
        %v253 = vld [vmem:[%s1 + $0x68] sm:$0xf]
        %v254 = vld [vmem:[%s1 + $0x6c] sm:$0xff]
        %v255 = vld [vmem:[%s1 + $0x74] sm:$0xf]
        %v256 = vld [vmem:[%s1 + $0x78] sm:$0xff]
        %v257 = vld [vmem:[%s1 + $0x80] sm:$0xf]
        %v258 = vld [vmem:[%s1 + $0x84] sm:$0xff]
        %v259 = vld [vmem:[%s1 + $0x8c] sm:$0xf]
        %v260 = vld [vmem:[%s2] sm:$0x7]
        %v261 = vld [vmem:[%s3] sm:$0xf]
        %v262 = vld [vmem:[%s3 + $0x4] sm:$0xf]
        %v263 = vld [vmem:[%s3 + $0x8] sm:$0xf]
        %v264 = vld [vmem:[%s3 + $0xc] sm:$0xf]
        %v265 = vld [vmem:[%s3 + $0x10] sm:$0xf]
        %v266 = vld [vmem:[%s3 + $0x14] sm:$0xf]
        %v267 = vld [vmem:[%s3 + $0x18] sm:$0xf]
        %v268 = vld [vmem:[%s3 + $0x1c] sm:$0xf]
        %v269 = vld [vmem:[%s3 + $0x20] sm:$0xf]
        %v270 = vld [vmem:[%s3 + $0x24] sm:$0xf]
        %v271 = vld [vmem:[%s3 + $0x28] sm:$0xf]
        %v272 = vld [vmem:[%s3 + $0x2c] sm:$0xf]
        %v273 = vld [vmem:[%s4] sm:$0x1]
        %v275 = vlaneseq
        %v276 = vshrl.u32 %v275, 7
        %v277 = vsub.s32 0, %v276
        %v278 = vrot.slane %v260, %v277
        %v279 = vlaneseq
        %v280 = vshrl.u32 %v279, 7
        %v281 = vsub.s32 1, %v280
        %v282 = vrot.slane %v260, %v281
        %v283 = vlaneseq
        %v284 = vshrl.u32 %v283, 7
        %v285 = vsub.s32 2, %v284
        %v286 = vrot.slane %v260, %v285
        %v314 = vunpack.c.l.b16 %v236
        %v315 = vunpack.c.h.b16 %v236
        %v316 = vunpack.c.l.b16 %v237
        %v317 = vunpack.c.l.b16 %v238
        %v318 = vunpack.c.h.b16 %v238
        %v319 = vunpack.c.l.b16 %v239
        %v320 = vunpack.c.l.b16 %v240
        %v321 = vunpack.c.h.b16 %v240
        %v322 = vunpack.c.l.b16 %v241
        %v323 = vunpack.c.l.b16 %v242
        %v324 = vunpack.c.h.b16 %v242
        %v325 = vunpack.c.l.b16 %v243
        %v326 = vunpack.c.l.b16 %v244
        %v327 = vunpack.c.h.b16 %v244
        %v328 = vunpack.c.l.b16 %v245
        %v329 = vunpack.c.l.b16 %v246
        %v330 = vunpack.c.h.b16 %v246
        %v331 = vunpack.c.l.b16 %v247
        %v332 = vunpack.c.l.b16 %v248
        %v333 = vunpack.c.h.b16 %v248
        %v334 = vunpack.c.l.b16 %v249
        %v335 = vunpack.c.l.b16 %v250
        %v336 = vunpack.c.h.b16 %v250
        %v337 = vunpack.c.l.b16 %v251
        %v338 = vunpack.c.l.b16 %v252
        %v339 = vunpack.c.h.b16 %v252
        %v340 = vunpack.c.l.b16 %v253
        %v341 = vunpack.c.l.b16 %v254
        %v342 = vunpack.c.h.b16 %v254
        %v343 = vunpack.c.l.b16 %v255
        %v344 = vunpack.c.l.b16 %v256
        %v345 = vunpack.c.h.b16 %v256
        %v346 = vunpack.c.l.b16 %v257
        %v347 = vunpack.c.l.b16 %v258
        %v348 = vunpack.c.h.b16 %v258
        %v349 = vunpack.c.l.b16 %v259
        %v350 = vpack.c.b16 %v317, %v314
        %v351 = vpack.c.b16 %v318, %v315
        %v352 = vpack.c.b16 %v319, %v316
        %v353 = vpack.c.b16 %v323, %v320
        %v354 = vpack.c.b16 %v324, %v321
        %v355 = vpack.c.b16 %v325, %v322
        %v356 = vpack.c.b16 %v329, %v326
        %v357 = vpack.c.b16 %v330, %v327
        %v358 = vpack.c.b16 %v331, %v328
        %v359 = vpack.c.b16 %v335, %v332
        %v360 = vpack.c.b16 %v336, %v333
        %v361 = vpack.c.b16 %v337, %v334
        %v362 = vpack.c.b16 %v341, %v338
        %v363 = vpack.c.b16 %v342, %v339
        %v364 = vpack.c.b16 %v343, %v340
        %v365 = vpack.c.b16 %v347, %v344
        %v366 = vpack.c.b16 %v348, %v345
        %v367 = vpack.c.b16 %v349, %v346
        %vm386 = vcmask 785408
        %v388 = vsel %vm386, %v232, 0
        %v391 = vsel %vm386, %v233, 0
        %v394 = vsel %vm386, %v234, 0
        %v397 = vsel %vm386, %v235, 0
        %399 = vmatprep.subr.bf16.mxu0 0
        %400 = vmatpush1.bf16.msra.mxu0 0
        %401 = vmatprep.subr.bf16.mxu0 0
        %402 = vmatpush1.bf16.msra.mxu0 0
        %403 = vmatprep.subr.bf16.mxu0 %v366
        %404 = vmatpush1.bf16.msra.mxu0 %v365
        %405 = vmatprep.subr.bf16.mxu0 %v363
        %406 = vmatpush1.bf16.msra.mxu0 %v362
        %407 = vmatprep.subr.bf16.mxu0 %v360
        %408 = vmatpush1.bf16.msra.mxu0 %v359
        %409 = vmatprep.subr.bf16.mxu0 %v357
        %410 = vmatpush1.bf16.msra.mxu0 %v356
        %411 = vmatprep.subr.bf16.mxu0 %v354
        %412 = vmatpush1.bf16.msra.mxu0 %v353
        %413 = vmatprep.subr.bf16.mxu0 %v351
        %414 = vmatpush1.bf16.msra.mxu0 %v350
        %415 = vmatprep.subr.bf16.mxu0 0
        %416 = vmatpush2.bf16.msra.mxu0 0
        %417 = vmatprep.subr.bf16.mxu0 0
        %418 = vmatpush2.bf16.msra.mxu0 0
        %419 = vmatprep.subr.bf16.mxu0 0
        %420 = vmatpush2.bf16.msra.mxu0 0
        %421 = vmatprep.subr.bf16.mxu0 0
        %422 = vmatpush2.bf16.msra.mxu0 0
        %423 = vmatprep.subr.bf16.mxu0 0
        %424 = vmatpush2.bf16.msra.mxu0 0
        %425 = vmatprep.subr.bf16.mxu0 0
        %426 = vmatpush2.bf16.msra.mxu0 0
        %427 = vmatprep.subr.bf16.mxu0 0
        %428 = vmatpush2.bf16.msra.mxu0 0
        %429 = vmatprep.subr.bf16.mxu0 0
        %430 = vmatpush2.bf16.msra.mxu0 0
        %431 = vmatprep.mubr.bf16.mxu0 0
        %432 = vmatmul.mubr.bf16.gmra.mxu0 %v388
        %v433 = vpop.f32.mrf.mxu0
        %v434 = vadd.f32 %v278, %v433
        %v435 = vpop.f32.mrf.mxu0
        %v436 = vadd.f32 %v282, %v435
        %v437 = vpop.f32.mrf.mxu0
        %v438 = vadd.f32 %v278, %v437
        %v439 = vpop.f32.mrf.mxu0
        %v440 = vadd.f32 %v282, %v439
        %441 = vmatprep.mubr.bf16.mxu0 0
        %442 = vmatmul.mubr.bf16.gmra.mxu0 %v391
        %v443 = vpop.f32.mrf.mxu0
        %v444 = vadd.f32 %v278, %v443
        %v445 = vpop.f32.mrf.mxu0
        %v446 = vadd.f32 %v282, %v445
        %v447 = vpop.f32.mrf.mxu0
        %v448 = vadd.f32 %v278, %v447
        %v449 = vpop.f32.mrf.mxu0
        %v450 = vadd.f32 %v282, %v449
        %451 = vmatprep.mubr.bf16.mxu0 0
        %452 = vmatmul.mubr.bf16.gmra.mxu0 %v394
        %v453 = vpop.f32.mrf.mxu0
        %v454 = vadd.f32 %v278, %v453
        %v455 = vpop.f32.mrf.mxu0
        %v456 = vadd.f32 %v282, %v455
        %v457 = vpop.f32.mrf.mxu0
        %v458 = vadd.f32 %v278, %v457
        %v459 = vpop.f32.mrf.mxu0
        %v460 = vadd.f32 %v282, %v459
        %461 = vmatprep.mubr.bf16.mxu0 0
        %462 = vmatmul.mubr.bf16.gmra.mxu0 %v397
        %v463 = vpop.f32.mrf.mxu0
        %v464 = vadd.f32 %v278, %v463
        %v465 = vpop.f32.mrf.mxu0
        %v466 = vadd.f32 %v282, %v465
        %v467 = vpop.f32.mrf.mxu0
        %v468 = vadd.f32 %v278, %v467
        %v469 = vpop.f32.mrf.mxu0
        %v470 = vadd.f32 %v282, %v469
        %471 = vdwg.mxu0
        %472 = vmatprep.subr.bf16.mxu0 0
        %473 = vmatpush1.bf16.msra.mxu0 0
        %474 = vmatprep.subr.bf16.mxu0 0
        %475 = vmatpush1.bf16.msra.mxu0 0
        %476 = vmatprep.subr.bf16.mxu0 0
        %477 = vmatpush1.bf16.msra.mxu0 %v367
        %478 = vmatprep.subr.bf16.mxu0 0
        %479 = vmatpush1.bf16.msra.mxu0 %v364
        %480 = vmatprep.subr.bf16.mxu0 0
        %481 = vmatpush1.bf16.msra.mxu0 %v361
        %482 = vmatprep.subr.bf16.mxu0 0
        %483 = vmatpush1.bf16.msra.mxu0 %v358
        %484 = vmatprep.subr.bf16.mxu0 0
        %485 = vmatpush1.bf16.msra.mxu0 %v355
        %486 = vmatprep.subr.bf16.mxu0 0
        %487 = vmatpush1.bf16.msra.mxu0 %v352
        %488 = vmatprep.subr.bf16.mxu0 0
        %489 = vmatpush2.bf16.msra.mxu0 0
        %490 = vmatprep.subr.bf16.mxu0 0
        %491 = vmatpush2.bf16.msra.mxu0 0
        %492 = vmatprep.subr.bf16.mxu0 0
        %493 = vmatpush2.bf16.msra.mxu0 0
        %494 = vmatprep.subr.bf16.mxu0 0
        %495 = vmatpush2.bf16.msra.mxu0 0
        %496 = vmatprep.subr.bf16.mxu0 0
        %497 = vmatpush2.bf16.msra.mxu0 0
        %498 = vmatprep.subr.bf16.mxu0 0
        %499 = vmatpush2.bf16.msra.mxu0 0
        %500 = vmatprep.subr.bf16.mxu0 0
        %501 = vmatpush2.bf16.msra.mxu0 0
        %502 = vmatprep.subr.bf16.mxu0 0
        %503 = vmatpush2.bf16.msra.mxu0 0
        %504 = vmatprep.mubr.bf16.mxu0 0
        %505 = vmatmul.mubr.bf16.gmra.mxu0 %v388
        %v506 = vpop.f32.mrf.mxu0
        %v507 = vadd.f32 %v286, %v506
        %v508 = vpop.f32.mrf.mxu0
        %v509 = vpop.f32.mrf.mxu0
        %v510 = vadd.f32 %v286, %v509
        %v511 = vpop.f32.mrf.mxu0
        %512 = vmatprep.mubr.bf16.mxu0 0
        %513 = vmatmul.mubr.bf16.gmra.mxu0 %v391
        %v514 = vpop.f32.mrf.mxu0
        %v515 = vadd.f32 %v286, %v514
        %v516 = vpop.f32.mrf.mxu0
        %v517 = vpop.f32.mrf.mxu0
        %v518 = vadd.f32 %v286, %v517
        %v519 = vpop.f32.mrf.mxu0
        %520 = vmatprep.mubr.bf16.mxu0 0
        %521 = vmatmul.mubr.bf16.gmra.mxu0 %v394
        %v522 = vpop.f32.mrf.mxu0
        %v523 = vadd.f32 %v286, %v522
        %v524 = vpop.f32.mrf.mxu0
        %v525 = vpop.f32.mrf.mxu0
        %v526 = vadd.f32 %v286, %v525
        %v527 = vpop.f32.mrf.mxu0
        %528 = vmatprep.mubr.bf16.mxu0 0
        %529 = vmatmul.mubr.bf16.gmra.mxu0 %v397
        %v530 = vpop.f32.mrf.mxu0
        %v531 = vadd.f32 %v286, %v530
        %v532 = vpop.f32.mrf.mxu0
        %v533 = vpop.f32.mrf.mxu0
        %v534 = vadd.f32 %v286, %v533
        %v535 = vpop.f32.mrf.mxu0
        %536 = vdwg.mxu0
        %v537 = vpack.c.bf16 %v438, %v434
        %v538 = vpack.c.bf16 %v440, %v436
        %v539 = vpack.c.bf16 %v510, %v507
        %v540 = vpack.c.bf16 %v448, %v444
        %v541 = vpack.c.bf16 %v450, %v446
        %v542 = vpack.c.bf16 %v518, %v515
        %v543 = vpack.c.bf16 %v458, %v454
        %v544 = vpack.c.bf16 %v460, %v456
        %v545 = vpack.c.bf16 %v526, %v523
        %v546 = vpack.c.bf16 %v468, %v464
        %v547 = vpack.c.bf16 %v470, %v466
        %v548 = vpack.c.bf16 %v534, %v531
        %553 = vrot.lane.b32.xlu0 %v537, 32
        %v554 = vpop.permute.xlu0 %553
        %555 = vrot.lane.b32.xlu0 %v540, 32
        %v556 = vpop.permute.xlu0 %555
        %557 = vrot.lane.b32.xlu0 %v543, 32
        %v558 = vpop.permute.xlu0 %557
        %559 = vrot.lane.b32.xlu0 %v546, 32
        %v560 = vpop.permute.xlu0 %559
        %vm561 = vcmask 195584
        %v563 = vsel %vm561, %v537, 0
        %v566 = vsel %vm561, %v540, 0
        %v569 = vsel %vm561, %v543, 0
        %v572 = vsel %vm561, %v546, 0
        %v575 = vsel %vm561, %v554, 0
        %v578 = vsel %vm561, %v556, 0
        %v581 = vsel %vm561, %v558, 0
        %v584 = vsel %vm561, %v560, 0
        %586 = vmatprep.subr.bf16.mxu0 0
        %587 = vmatpush1.bf16.xpose.msra.mxu0 0
        %588 = vmatprep.subr.bf16.mxu0 0
        %589 = vmatpush1.bf16.xpose.msra.mxu0 0
        %590 = vmatprep.subr.bf16.mxu0 0
        %591 = vmatpush1.bf16.xpose.msra.mxu0 0
        %592 = vmatprep.subr.bf16.mxu0 0
        %593 = vmatpush1.bf16.xpose.msra.mxu0 0
        %594 = vmatprep.subr.bf16.mxu0 0
        %595 = vmatpush1.bf16.xpose.msra.mxu0 %v584
        %596 = vmatprep.subr.bf16.mxu0 0
        %597 = vmatpush1.bf16.xpose.msra.mxu0 %v581
        %598 = vmatprep.subr.bf16.mxu0 0
        %599 = vmatpush1.bf16.xpose.msra.mxu0 %v578
        %600 = vmatprep.subr.bf16.mxu0 0
        %601 = vmatpush1.bf16.xpose.msra.mxu0 %v575
        %602 = vmatprep.subr.bf16.mxu0 0
        %603 = vmatpush2.bf16.xpose.msra.mxu0 0
        %604 = vmatprep.subr.bf16.mxu0 0
        %605 = vmatpush2.bf16.xpose.msra.mxu0 0
        %606 = vmatprep.subr.bf16.mxu0 0
        %607 = vmatpush2.bf16.xpose.msra.mxu0 0
        %608 = vmatprep.subr.bf16.mxu0 0
        %609 = vmatpush2.bf16.xpose.msra.mxu0 0
        %610 = vmatprep.subr.bf16.mxu0 0
        %611 = vmatpush2.bf16.xpose.msra.mxu0 0
        %612 = vmatprep.subr.bf16.mxu0 0
        %613 = vmatpush2.bf16.xpose.msra.mxu0 0
        %614 = vmatprep.subr.bf16.mxu0 0
        %615 = vmatpush2.bf16.xpose.msra.mxu0 0
        %616 = vmatprep.subr.bf16.mxu0 0
        %617 = vmatpush2.bf16.xpose.msra.mxu0 0
        %618 = vmatprep.mubr.bf16.mxu0 0
        %619 = vmatmul.mubr.bf16.gmra.mxu0 %v563
        %v620 = vpop.f32.mrf.mxu0
        %v621 = vadd.f32 0.0, %v620
        %v622 = vpop.f32.mrf.mxu0
        %v623 = vpop.f32.mrf.mxu0
        %v624 = vadd.f32 0.0, %v623
        %v625 = vpop.f32.mrf.mxu0
        %626 = vmatprep.mubr.bf16.mxu0 0
        %627 = vmatmul.mubr.bf16.gmra.mxu0 %v566
        %v628 = vpop.f32.mrf.mxu0
        %v629 = vadd.f32 0.0, %v628
        %v630 = vpop.f32.mrf.mxu0
        %v631 = vpop.f32.mrf.mxu0
        %v632 = vadd.f32 0.0, %v631
        %v633 = vpop.f32.mrf.mxu0
        %634 = vmatprep.mubr.bf16.mxu0 0
        %635 = vmatmul.mubr.bf16.gmra.mxu0 %v569
        %v636 = vpop.f32.mrf.mxu0
        %v637 = vadd.f32 0.0, %v636
        %v638 = vpop.f32.mrf.mxu0
        %v639 = vpop.f32.mrf.mxu0
        %v640 = vadd.f32 0.0, %v639
        %v641 = vpop.f32.mrf.mxu0
        %642 = vmatprep.mubr.bf16.mxu0 0
        %643 = vmatmul.mubr.bf16.gmra.mxu0 %v572
        %v644 = vpop.f32.mrf.mxu0
        %v645 = vadd.f32 0.0, %v644
        %v646 = vpop.f32.mrf.mxu0
        %v647 = vpop.f32.mrf.mxu0
        %v648 = vadd.f32 0.0, %v647
        %v649 = vpop.f32.mrf.mxu0
        %650 = vdwg.mxu0
        %vm651 = vcmask 523264
        %v652 = vsel %vm651, %v621, -inf
        %653 = vmax.xlane.f32.xlu0 %v652
        %v654 = vpop.xlane.xlu0 %653
        %v655 = vsel %vm651, %v624, -inf
        %656 = vmax.xlane.f32.xlu0 %v655
        %v657 = vpop.xlane.xlu0 %656
        %v658 = vsel %vm651, %v629, -inf
        %659 = vmax.xlane.f32.xlu0 %v658
        %v660 = vpop.xlane.xlu0 %659
        %v661 = vsel %vm651, %v632, -inf
        %662 = vmax.xlane.f32.xlu0 %v661
        %v663 = vpop.xlane.xlu0 %662
        %v664 = vsel %vm651, %v637, -inf
        %665 = vmax.xlane.f32.xlu0 %v664
        %v666 = vpop.xlane.xlu0 %665
        %v667 = vsel %vm651, %v640, -inf
        %668 = vmax.xlane.f32.xlu0 %v667
        %v669 = vpop.xlane.xlu0 %668
        %v670 = vsel %vm651, %v645, -inf
        %671 = vmax.xlane.f32.xlu0 %v670
        %v672 = vpop.xlane.xlu0 %671
        %v673 = vsel %vm651, %v648, -inf
        %674 = vmax.xlane.f32.xlu0 %v673
        %v675 = vpop.xlane.xlu0 %674
        %v676 = vsub.f32 %v621, %v654
        %v677 = vsub.f32 %v624, %v657
        %v678 = vsub.f32 %v629, %v660
        %v679 = vsub.f32 %v632, %v663
        %v680 = vsub.f32 %v637, %v666
        %v681 = vsub.f32 %v640, %v669
        %v682 = vsub.f32 %v645, %v672
        %v683 = vsub.f32 %v648, %v675
        %v684 = vmul.f32 %v676, 1.442695
        %v685 = vpow.pop %v684
        %v686 = vmul.f32 %v677, 1.442695
        %v687 = vpow.pop %v686
        %v688 = vmul.f32 %v678, 1.442695
        %v689 = vpow.pop %v688
        %v690 = vmul.f32 %v679, 1.442695
        %v691 = vpow.pop %v690
        %v692 = vmul.f32 %v680, 1.442695
        %v693 = vpow.pop %v692
        %v694 = vmul.f32 %v681, 1.442695
        %v695 = vpow.pop %v694
        %v696 = vmul.f32 %v682, 1.442695
        %v697 = vpow.pop %v696
        %v698 = vmul.f32 %v683, 1.442695
        %v699 = vpow.pop %v698
        %v700 = vsel %vm651, %v685, 0.0
        %701 = vadd.xlane.f32.xlu0 %v700
        %v702 = vpop.xlane.xlu0 %701
        %v703 = vsel %vm651, %v687, 0.0
        %704 = vadd.xlane.f32.xlu0 %v703
        %v705 = vpop.xlane.xlu0 %704
        %v706 = vsel %vm651, %v689, 0.0
        %707 = vadd.xlane.f32.xlu0 %v706
        %v708 = vpop.xlane.xlu0 %707
        %v709 = vsel %vm651, %v691, 0.0
        %710 = vadd.xlane.f32.xlu0 %v709
        %v711 = vpop.xlane.xlu0 %710
        %v712 = vsel %vm651, %v693, 0.0
        %713 = vadd.xlane.f32.xlu0 %v712
        %v714 = vpop.xlane.xlu0 %713
        %v715 = vsel %vm651, %v695, 0.0
        %716 = vadd.xlane.f32.xlu0 %v715
        %v717 = vpop.xlane.xlu0 %716
        %v718 = vsel %vm651, %v697, 0.0
        %719 = vadd.xlane.f32.xlu0 %v718
        %v720 = vpop.xlane.xlu0 %719
        %v721 = vsel %vm651, %v699, 0.0
        %722 = vadd.xlane.f32.xlu0 %v721
        %v723 = vpop.xlane.xlu0 %722
        %v724 = vpack.c.bf16 %v687, %v685
        %v725 = vpack.c.bf16 %v691, %v689
        %v726 = vpack.c.bf16 %v695, %v693
        %v727 = vpack.c.bf16 %v699, %v697
        %732 = vrot.lane.b32.xlu0 %v538, 64
        %v733 = vpop.permute.xlu0 %732
        %734 = vrot.lane.b32.xlu0 %v541, 64
        %v735 = vpop.permute.xlu0 %734
        %736 = vrot.lane.b32.xlu0 %v544, 64
        %v737 = vpop.permute.xlu0 %736
        %738 = vrot.lane.b32.xlu0 %v547, 64
        %v739 = vpop.permute.xlu0 %738
        %v745 = vsel %vm651, %v724, 0
        %v748 = vsel %vm651, %v725, 0
        %v751 = vsel %vm651, %v726, 0
        %v754 = vsel %vm651, %v727, 0
        %756 = vmatprep.subr.bf16.mxu0 0
        %757 = vmatpush1.bf16.msra.mxu0 0
        %758 = vmatprep.subr.bf16.mxu0 0
        %759 = vmatpush1.bf16.msra.mxu0 0
        %760 = vmatprep.subr.bf16.mxu0 0
        %761 = vmatpush1.bf16.msra.mxu0 0
        %762 = vmatprep.subr.bf16.mxu0 0
        %763 = vmatpush1.bf16.msra.mxu0 0
        %764 = vmatprep.subr.bf16.mxu0 0
        %765 = vmatpush1.bf16.msra.mxu0 %v739
        %766 = vmatprep.subr.bf16.mxu0 0
        %767 = vmatpush1.bf16.msra.mxu0 %v737
        %768 = vmatprep.subr.bf16.mxu0 0
        %769 = vmatpush1.bf16.msra.mxu0 %v735
        %770 = vmatprep.subr.bf16.mxu0 0
        %771 = vmatpush1.bf16.msra.mxu0 %v733
        %772 = vmatprep.subr.bf16.mxu0 0
        %773 = vmatpush2.bf16.msra.mxu0 0
        %774 = vmatprep.subr.bf16.mxu0 0
        %775 = vmatpush2.bf16.msra.mxu0 0
        %776 = vmatprep.subr.bf16.mxu0 0
        %777 = vmatpush2.bf16.msra.mxu0 0
        %778 = vmatprep.subr.bf16.mxu0 0
        %779 = vmatpush2.bf16.msra.mxu0 0
        %780 = vmatprep.subr.bf16.mxu0 0
        %781 = vmatpush2.bf16.msra.mxu0 0
        %782 = vmatprep.subr.bf16.mxu0 0
        %783 = vmatpush2.bf16.msra.mxu0 0
        %784 = vmatprep.subr.bf16.mxu0 0
        %785 = vmatpush2.bf16.msra.mxu0 0
        %786 = vmatprep.subr.bf16.mxu0 0
        %787 = vmatpush2.bf16.msra.mxu0 0
        %788 = vmatprep.mubr.bf16.mxu0 0
        %789 = vmatmul.mubr.bf16.gmra.mxu0 %v745
        %v790 = vpop.f32.mrf.mxu0
        %v791 = vadd.f32 0.0, %v790
        %v792 = vpop.f32.mrf.mxu0
        %v793 = vpop.f32.mrf.mxu0
        %v794 = vadd.f32 0.0, %v793
        %v795 = vpop.f32.mrf.mxu0
        %796 = vmatprep.mubr.bf16.mxu0 0
        %797 = vmatmul.mubr.bf16.gmra.mxu0 %v748
        %v798 = vpop.f32.mrf.mxu0
        %v799 = vadd.f32 0.0, %v798
        %v800 = vpop.f32.mrf.mxu0
        %v801 = vpop.f32.mrf.mxu0
        %v802 = vadd.f32 0.0, %v801
        %v803 = vpop.f32.mrf.mxu0
        %804 = vmatprep.mubr.bf16.mxu0 0
        %805 = vmatmul.mubr.bf16.gmra.mxu0 %v751
        %v806 = vpop.f32.mrf.mxu0
        %v807 = vadd.f32 0.0, %v806
        %v808 = vpop.f32.mrf.mxu0
        %v809 = vpop.f32.mrf.mxu0
        %v810 = vadd.f32 0.0, %v809
        %v811 = vpop.f32.mrf.mxu0
        %812 = vmatprep.mubr.bf16.mxu0 0
        %813 = vmatmul.mubr.bf16.gmra.mxu0 %v754
        %v814 = vpop.f32.mrf.mxu0
        %v815 = vadd.f32 0.0, %v814
        %v816 = vpop.f32.mrf.mxu0
        %v817 = vpop.f32.mrf.mxu0
        %v818 = vadd.f32 0.0, %v817
        %v819 = vpop.f32.mrf.mxu0
        %820 = vdwg.mxu0
        %v821 = vrcp.pop %v702
        %v822 = vrcp.pop %v705
        %v823 = vrcp.pop %v708
        %v824 = vrcp.pop %v711
        %v825 = vrcp.pop %v714
        %v826 = vrcp.pop %v717
        %v827 = vrcp.pop %v720
        %v828 = vrcp.pop %v723
        %v829 = vmul.f32 %v791, %v821
        %v830 = vmul.f32 %v794, %v822
        %v831 = vmul.f32 %v799, %v823
        %v832 = vmul.f32 %v802, %v824
        %v833 = vmul.f32 %v807, %v825
        %v834 = vmul.f32 %v810, %v826
        %v835 = vmul.f32 %v815, %v827
        %v836 = vmul.f32 %v818, %v828
        %v837 = vpack.c.bf16 %v830, %v829
        %v838 = vpack.c.bf16 %v832, %v831
        %v839 = vpack.c.bf16 %v834, %v833
        %v840 = vpack.c.bf16 %v836, %v835
        %841 = vrot.lane.b32.xlu0 %v537, 104
        %v842 = vpop.permute.xlu0 %841
        %843 = vrot.lane.b32.xlu0 %v540, 104
        %v844 = vpop.permute.xlu0 %843
        %845 = vrot.lane.b32.xlu0 %v543, 104
        %v846 = vpop.permute.xlu0 %845
        %847 = vrot.lane.b32.xlu0 %v546, 104
        %v848 = vpop.permute.xlu0 %847
        %849 = vrot.lane.b32.xlu0 %v537, 8
        %v850 = vpop.permute.xlu0 %849
        %851 = vrot.lane.b32.xlu0 %v538, 8
        %v852 = vpop.permute.xlu0 %851
        %853 = vrot.lane.b32.xlu0 %v540, 8
        %v854 = vpop.permute.xlu0 %853
        %855 = vrot.lane.b32.xlu0 %v541, 8
        %v856 = vpop.permute.xlu0 %855
        %857 = vrot.lane.b32.xlu0 %v543, 8
        %v858 = vpop.permute.xlu0 %857
        %859 = vrot.lane.b32.xlu0 %v544, 8
        %v860 = vpop.permute.xlu0 %859
        %861 = vrot.lane.b32.xlu0 %v546, 8
        %v862 = vpop.permute.xlu0 %861
        %863 = vrot.lane.b32.xlu0 %v547, 8
        %v864 = vpop.permute.xlu0 %863
        %vm865 = vcmask 64512
        %v866 = vsel %vm865, %v850, %v852
        %v867 = vsel %vm865, %v854, %v856
        %v868 = vsel %vm865, %v858, %v860
        %v869 = vsel %vm865, %v862, %v864
        %v871 = vsel %vm561, %v842, 0
        %v874 = vsel %vm561, %v844, 0
        %v877 = vsel %vm561, %v846, 0
        %v880 = vsel %vm561, %v848, 0
        %v883 = vsel %vm561, %v866, 0
        %v886 = vsel %vm561, %v867, 0
        %v889 = vsel %vm561, %v868, 0
        %v892 = vsel %vm561, %v869, 0
        %894 = vmatprep.subr.bf16.mxu0 0
        %895 = vmatpush1.bf16.xpose.msra.mxu0 0
        %896 = vmatprep.subr.bf16.mxu0 0
        %897 = vmatpush1.bf16.xpose.msra.mxu0 0
        %898 = vmatprep.subr.bf16.mxu0 0
        %899 = vmatpush1.bf16.xpose.msra.mxu0 0
        %900 = vmatprep.subr.bf16.mxu0 0
        %901 = vmatpush1.bf16.xpose.msra.mxu0 0
        %902 = vmatprep.subr.bf16.mxu0 0
        %903 = vmatpush1.bf16.xpose.msra.mxu0 %v892
        %904 = vmatprep.subr.bf16.mxu0 0
        %905 = vmatpush1.bf16.xpose.msra.mxu0 %v889
        %906 = vmatprep.subr.bf16.mxu0 0
        %907 = vmatpush1.bf16.xpose.msra.mxu0 %v886
        %908 = vmatprep.subr.bf16.mxu0 0
        %909 = vmatpush1.bf16.xpose.msra.mxu0 %v883
        %910 = vmatprep.subr.bf16.mxu0 0
        %911 = vmatpush2.bf16.xpose.msra.mxu0 0
        %912 = vmatprep.subr.bf16.mxu0 0
        %913 = vmatpush2.bf16.xpose.msra.mxu0 0
        %914 = vmatprep.subr.bf16.mxu0 0
        %915 = vmatpush2.bf16.xpose.msra.mxu0 0
        %916 = vmatprep.subr.bf16.mxu0 0
        %917 = vmatpush2.bf16.xpose.msra.mxu0 0
        %918 = vmatprep.subr.bf16.mxu0 0
        %919 = vmatpush2.bf16.xpose.msra.mxu0 0
        %920 = vmatprep.subr.bf16.mxu0 0
        %921 = vmatpush2.bf16.xpose.msra.mxu0 0
        %922 = vmatprep.subr.bf16.mxu0 0
        %923 = vmatpush2.bf16.xpose.msra.mxu0 0
        %924 = vmatprep.subr.bf16.mxu0 0
        %925 = vmatpush2.bf16.xpose.msra.mxu0 0
        %926 = vmatprep.mubr.bf16.mxu0 0
        %927 = vmatmul.mubr.bf16.gmra.mxu0 %v871
        %v928 = vpop.f32.mrf.mxu0
        %v929 = vadd.f32 0.0, %v928
        %v930 = vpop.f32.mrf.mxu0
        %v931 = vpop.f32.mrf.mxu0
        %v932 = vadd.f32 0.0, %v931
        %v933 = vpop.f32.mrf.mxu0
        %934 = vmatprep.mubr.bf16.mxu0 0
        %935 = vmatmul.mubr.bf16.gmra.mxu0 %v874
        %v936 = vpop.f32.mrf.mxu0
        %v937 = vadd.f32 0.0, %v936
        %v938 = vpop.f32.mrf.mxu0
        %v939 = vpop.f32.mrf.mxu0
        %v940 = vadd.f32 0.0, %v939
        %v941 = vpop.f32.mrf.mxu0
        %942 = vmatprep.mubr.bf16.mxu0 0
        %943 = vmatmul.mubr.bf16.gmra.mxu0 %v877
        %v944 = vpop.f32.mrf.mxu0
        %v945 = vadd.f32 0.0, %v944
        %v946 = vpop.f32.mrf.mxu0
        %v947 = vpop.f32.mrf.mxu0
        %v948 = vadd.f32 0.0, %v947
        %v949 = vpop.f32.mrf.mxu0
        %950 = vmatprep.mubr.bf16.mxu0 0
        %951 = vmatmul.mubr.bf16.gmra.mxu0 %v880
        %v952 = vpop.f32.mrf.mxu0
        %v953 = vadd.f32 0.0, %v952
        %v954 = vpop.f32.mrf.mxu0
        %v955 = vpop.f32.mrf.mxu0
        %v956 = vadd.f32 0.0, %v955
        %v957 = vpop.f32.mrf.mxu0
        %958 = vdwg.mxu0
        %v959 = vsel %vm651, %v929, -inf
        %960 = vmax.xlane.f32.xlu0 %v959
        %v961 = vpop.xlane.xlu0 %960
        %v962 = vsel %vm651, %v932, -inf
        %963 = vmax.xlane.f32.xlu0 %v962
        %v964 = vpop.xlane.xlu0 %963
        %v965 = vsel %vm651, %v937, -inf
        %966 = vmax.xlane.f32.xlu0 %v965
        %v967 = vpop.xlane.xlu0 %966
        %v968 = vsel %vm651, %v940, -inf
        %969 = vmax.xlane.f32.xlu0 %v968
        %v970 = vpop.xlane.xlu0 %969
        %v971 = vsel %vm651, %v945, -inf
        %972 = vmax.xlane.f32.xlu0 %v971
        %v973 = vpop.xlane.xlu0 %972
        %v974 = vsel %vm651, %v948, -inf
        %975 = vmax.xlane.f32.xlu0 %v974
        %v976 = vpop.xlane.xlu0 %975
        %v977 = vsel %vm651, %v953, -inf
        %978 = vmax.xlane.f32.xlu0 %v977
        %v979 = vpop.xlane.xlu0 %978
        %v980 = vsel %vm651, %v956, -inf
        %981 = vmax.xlane.f32.xlu0 %v980
        %v982 = vpop.xlane.xlu0 %981
        %v983 = vsub.f32 %v929, %v961
        %v984 = vsub.f32 %v932, %v964
        %v985 = vsub.f32 %v937, %v967
        %v986 = vsub.f32 %v940, %v970
        %v987 = vsub.f32 %v945, %v973
        %v988 = vsub.f32 %v948, %v976
        %v989 = vsub.f32 %v953, %v979
        %v990 = vsub.f32 %v956, %v982
        %v991 = vmul.f32 %v983, 1.442695
        %v992 = vpow.pop %v991
        %v993 = vmul.f32 %v984, 1.442695
        %v994 = vpow.pop %v993
        %v995 = vmul.f32 %v985, 1.442695
        %v996 = vpow.pop %v995
        %v997 = vmul.f32 %v986, 1.442695
        %v998 = vpow.pop %v997
        %v999 = vmul.f32 %v987, 1.442695
        %v1000 = vpow.pop %v999
        %v1001 = vmul.f32 %v988, 1.442695
        %v1002 = vpow.pop %v1001
        %v1003 = vmul.f32 %v989, 1.442695
        %v1004 = vpow.pop %v1003
        %v1005 = vmul.f32 %v990, 1.442695
        %v1006 = vpow.pop %v1005
        %v1007 = vsel %vm651, %v992, 0.0
        %1008 = vadd.xlane.f32.xlu0 %v1007
        %v1009 = vpop.xlane.xlu0 %1008
        %v1010 = vsel %vm651, %v994, 0.0
        %1011 = vadd.xlane.f32.xlu0 %v1010
        %v1012 = vpop.xlane.xlu0 %1011
        %v1013 = vsel %vm651, %v996, 0.0
        %1014 = vadd.xlane.f32.xlu0 %v1013
        %v1015 = vpop.xlane.xlu0 %1014
        %v1016 = vsel %vm651, %v998, 0.0
        %1017 = vadd.xlane.f32.xlu0 %v1016
        %v1018 = vpop.xlane.xlu0 %1017
        %v1019 = vsel %vm651, %v1000, 0.0
        %1020 = vadd.xlane.f32.xlu0 %v1019
        %v1021 = vpop.xlane.xlu0 %1020
        %v1022 = vsel %vm651, %v1002, 0.0
        %1023 = vadd.xlane.f32.xlu0 %v1022
        %v1024 = vpop.xlane.xlu0 %1023
        %v1025 = vsel %vm651, %v1004, 0.0
        %1026 = vadd.xlane.f32.xlu0 %v1025
        %v1027 = vpop.xlane.xlu0 %1026
        %v1028 = vsel %vm651, %v1006, 0.0
        %1029 = vadd.xlane.f32.xlu0 %v1028
        %v1030 = vpop.xlane.xlu0 %1029
        %v1031 = vpack.c.bf16 %v994, %v992
        %v1032 = vpack.c.bf16 %v998, %v996
        %v1033 = vpack.c.bf16 %v1002, %v1000
        %v1034 = vpack.c.bf16 %v1006, %v1004
        %1035 = vrot.lane.b32.xlu0 %v538, 40
        %v1036 = vpop.permute.xlu0 %1035
        %1037 = vrot.lane.b32.xlu0 %v541, 40
        %v1038 = vpop.permute.xlu0 %1037
        %1039 = vrot.lane.b32.xlu0 %v544, 40
        %v1040 = vpop.permute.xlu0 %1039
        %1041 = vrot.lane.b32.xlu0 %v547, 40
        %v1042 = vpop.permute.xlu0 %1041
        %v1048 = vsel %vm651, %v1031, 0
        %v1051 = vsel %vm651, %v1032, 0
        %v1054 = vsel %vm651, %v1033, 0
        %v1057 = vsel %vm651, %v1034, 0
        %1059 = vmatprep.subr.bf16.mxu0 0
        %1060 = vmatpush1.bf16.msra.mxu0 0
        %1061 = vmatprep.subr.bf16.mxu0 0
        %1062 = vmatpush1.bf16.msra.mxu0 0
        %1063 = vmatprep.subr.bf16.mxu0 0
        %1064 = vmatpush1.bf16.msra.mxu0 0
        %1065 = vmatprep.subr.bf16.mxu0 0
        %1066 = vmatpush1.bf16.msra.mxu0 0
        %1067 = vmatprep.subr.bf16.mxu0 0
        %1068 = vmatpush1.bf16.msra.mxu0 %v1042
        %1069 = vmatprep.subr.bf16.mxu0 0
        %1070 = vmatpush1.bf16.msra.mxu0 %v1040
        %1071 = vmatprep.subr.bf16.mxu0 0
        %1072 = vmatpush1.bf16.msra.mxu0 %v1038
        %1073 = vmatprep.subr.bf16.mxu0 0
        %1074 = vmatpush1.bf16.msra.mxu0 %v1036
        %1075 = vmatprep.subr.bf16.mxu0 0
        %1076 = vmatpush2.bf16.msra.mxu0 0
        %1077 = vmatprep.subr.bf16.mxu0 0
        %1078 = vmatpush2.bf16.msra.mxu0 0
        %1079 = vmatprep.subr.bf16.mxu0 0
        %1080 = vmatpush2.bf16.msra.mxu0 0
        %1081 = vmatprep.subr.bf16.mxu0 0
        %1082 = vmatpush2.bf16.msra.mxu0 0
        %1083 = vmatprep.subr.bf16.mxu0 0
        %1084 = vmatpush2.bf16.msra.mxu0 0
        %1085 = vmatprep.subr.bf16.mxu0 0
        %1086 = vmatpush2.bf16.msra.mxu0 0
        %1087 = vmatprep.subr.bf16.mxu0 0
        %1088 = vmatpush2.bf16.msra.mxu0 0
        %1089 = vmatprep.subr.bf16.mxu0 0
        %1090 = vmatpush2.bf16.msra.mxu0 0
        %1091 = vmatprep.mubr.bf16.mxu0 0
        %1092 = vmatmul.mubr.bf16.gmra.mxu0 %v1048
        %v1093 = vpop.f32.mrf.mxu0
        %v1094 = vadd.f32 0.0, %v1093
        %v1095 = vpop.f32.mrf.mxu0
        %v1096 = vpop.f32.mrf.mxu0
        %v1097 = vadd.f32 0.0, %v1096
        %v1098 = vpop.f32.mrf.mxu0
        %1099 = vmatprep.mubr.bf16.mxu0 0
        %1100 = vmatmul.mubr.bf16.gmra.mxu0 %v1051
        %v1101 = vpop.f32.mrf.mxu0
        %v1102 = vadd.f32 0.0, %v1101
        %v1103 = vpop.f32.mrf.mxu0
        %v1104 = vpop.f32.mrf.mxu0
        %v1105 = vadd.f32 0.0, %v1104
        %v1106 = vpop.f32.mrf.mxu0
        %1107 = vmatprep.mubr.bf16.mxu0 0
        %1108 = vmatmul.mubr.bf16.gmra.mxu0 %v1054
        %v1109 = vpop.f32.mrf.mxu0
        %v1110 = vadd.f32 0.0, %v1109
        %v1111 = vpop.f32.mrf.mxu0
        %v1112 = vpop.f32.mrf.mxu0
        %v1113 = vadd.f32 0.0, %v1112
        %v1114 = vpop.f32.mrf.mxu0
        %1115 = vmatprep.mubr.bf16.mxu0 0
        %1116 = vmatmul.mubr.bf16.gmra.mxu0 %v1057
        %v1117 = vpop.f32.mrf.mxu0
        %v1118 = vadd.f32 0.0, %v1117
        %v1119 = vpop.f32.mrf.mxu0
        %v1120 = vpop.f32.mrf.mxu0
        %v1121 = vadd.f32 0.0, %v1120
        %v1122 = vpop.f32.mrf.mxu0
        %1123 = vdwg.mxu0
        %v1124 = vrcp.pop %v1009
        %v1125 = vrcp.pop %v1012
        %v1126 = vrcp.pop %v1015
        %v1127 = vrcp.pop %v1018
        %v1128 = vrcp.pop %v1021
        %v1129 = vrcp.pop %v1024
        %v1130 = vrcp.pop %v1027
        %v1131 = vrcp.pop %v1030
        %v1132 = vmul.f32 %v1094, %v1124
        %v1133 = vmul.f32 %v1097, %v1125
        %v1134 = vmul.f32 %v1102, %v1126
        %v1135 = vmul.f32 %v1105, %v1127
        %v1136 = vmul.f32 %v1110, %v1128
        %v1137 = vmul.f32 %v1113, %v1129
        %v1138 = vmul.f32 %v1118, %v1130
        %v1139 = vmul.f32 %v1121, %v1131
        %v1140 = vpack.c.bf16 %v1133, %v1132
        %v1141 = vpack.c.bf16 %v1135, %v1134
        %v1142 = vpack.c.bf16 %v1137, %v1136
        %v1143 = vpack.c.bf16 %v1139, %v1138
        %v1147 = vunpack.c.l.b16 %v264
        %v1148 = vunpack.c.l.b16 %v265
        %v1149 = vunpack.c.l.b16 %v266
        %v1150 = vpack.c.b16 %v1148, %v1147
        %v1151 = vpack.c.b16 %v1149, %v1149
        %v1154 = vsel %vm561, %v1140, 0
        %v1157 = vsel %vm561, %v1141, 0
        %v1160 = vsel %vm561, %v1142, 0
        %v1163 = vsel %vm561, %v1143, 0
        %vm1165 = vcmask 1043456
        %v1167 = vsel %vm1165, %v1151, 0
        %1169 = vmatprep.subr.bf16.mxu0 0
        %1170 = vmatpush1.bf16.msra.mxu0 0
        %1171 = vmatprep.subr.bf16.mxu0 0
        %1172 = vmatpush1.bf16.msra.mxu0 0
        %1173 = vmatprep.subr.bf16.mxu0 0
        %1174 = vmatpush1.bf16.msra.mxu0 0
        %1175 = vmatprep.subr.bf16.mxu0 0
        %1176 = vmatpush1.bf16.msra.mxu0 0
        %1177 = vmatprep.subr.bf16.mxu0 0
        %1178 = vmatpush1.bf16.msra.mxu0 0
        %1179 = vmatprep.subr.bf16.mxu0 0
        %1180 = vmatpush1.bf16.msra.mxu0 0
        %1181 = vmatprep.subr.bf16.mxu0 0
        %1182 = vmatpush1.bf16.msra.mxu0 %v1167
        %1183 = vmatprep.subr.bf16.mxu0 0
        %1184 = vmatpush1.bf16.msra.mxu0 %v1150
        %1185 = vmatprep.subr.bf16.mxu0 0
        %1186 = vmatpush2.bf16.msra.mxu0 0
        %1187 = vmatprep.subr.bf16.mxu0 0
        %1188 = vmatpush2.bf16.msra.mxu0 0
        %1189 = vmatprep.subr.bf16.mxu0 0
        %1190 = vmatpush2.bf16.msra.mxu0 0
        %1191 = vmatprep.subr.bf16.mxu0 0
        %1192 = vmatpush2.bf16.msra.mxu0 0
        %1193 = vmatprep.subr.bf16.mxu0 0
        %1194 = vmatpush2.bf16.msra.mxu0 0
        %1195 = vmatprep.subr.bf16.mxu0 0
        %1196 = vmatpush2.bf16.msra.mxu0 0
        %1197 = vmatprep.subr.bf16.mxu0 0
        %1198 = vmatpush2.bf16.msra.mxu0 0
        %1199 = vmatprep.subr.bf16.mxu0 0
        %1200 = vmatpush2.bf16.msra.mxu0 0
        %1201 = vmatprep.mubr.bf16.mxu0 0
        %1202 = vmatmul.mubr.bf16.gmra.mxu0 %v1154
        %v1203 = vpop.f32.mrf.mxu0
        %v1204 = vadd.f32 0.0, %v1203
        %v1205 = vpop.f32.mrf.mxu0
        %v1206 = vpop.f32.mrf.mxu0
        %v1207 = vadd.f32 0.0, %v1206
        %v1208 = vpop.f32.mrf.mxu0
        %1209 = vmatprep.mubr.bf16.mxu0 0
        %1210 = vmatmul.mubr.bf16.gmra.mxu0 %v1157
        %v1211 = vpop.f32.mrf.mxu0
        %v1212 = vadd.f32 0.0, %v1211
        %v1213 = vpop.f32.mrf.mxu0
        %v1214 = vpop.f32.mrf.mxu0
        %v1215 = vadd.f32 0.0, %v1214
        %v1216 = vpop.f32.mrf.mxu0
        %1217 = vmatprep.mubr.bf16.mxu0 0
        %1218 = vmatmul.mubr.bf16.gmra.mxu0 %v1160
        %v1219 = vpop.f32.mrf.mxu0
        %v1220 = vadd.f32 0.0, %v1219
        %v1221 = vpop.f32.mrf.mxu0
        %v1222 = vpop.f32.mrf.mxu0
        %v1223 = vadd.f32 0.0, %v1222
        %v1224 = vpop.f32.mrf.mxu0
        %1225 = vmatprep.mubr.bf16.mxu0 0
        %1226 = vmatmul.mubr.bf16.gmra.mxu0 %v1163
        %v1227 = vpop.f32.mrf.mxu0
        %v1228 = vadd.f32 0.0, %v1227
        %v1229 = vpop.f32.mrf.mxu0
        %v1230 = vpop.f32.mrf.mxu0
        %v1231 = vadd.f32 0.0, %v1230
        %v1232 = vpop.f32.mrf.mxu0
        %1233 = vdwg.mxu0
        %v1237 = vunpack.c.l.b16 %v261
        %v1238 = vunpack.c.l.b16 %v262
        %v1239 = vunpack.c.l.b16 %v263
        %v1240 = vpack.c.b16 %v1238, %v1237
        %v1241 = vpack.c.b16 %v1239, %v1239
        %v1244 = vsel %vm561, %v837, 0
        %v1247 = vsel %vm561, %v838, 0
        %v1250 = vsel %vm561, %v839, 0
        %v1253 = vsel %vm561, %v840, 0
        %v1256 = vsel %vm1165, %v1241, 0
        %1258 = vmatprep.subr.bf16.mxu0 0
        %1259 = vmatpush1.bf16.msra.mxu0 0
        %1260 = vmatprep.subr.bf16.mxu0 0
        %1261 = vmatpush1.bf16.msra.mxu0 0
        %1262 = vmatprep.subr.bf16.mxu0 0
        %1263 = vmatpush1.bf16.msra.mxu0 0
        %1264 = vmatprep.subr.bf16.mxu0 0
        %1265 = vmatpush1.bf16.msra.mxu0 0
        %1266 = vmatprep.subr.bf16.mxu0 0
        %1267 = vmatpush1.bf16.msra.mxu0 0
        %1268 = vmatprep.subr.bf16.mxu0 0
        %1269 = vmatpush1.bf16.msra.mxu0 0
        %1270 = vmatprep.subr.bf16.mxu0 0
        %1271 = vmatpush1.bf16.msra.mxu0 %v1256
        %1272 = vmatprep.subr.bf16.mxu0 0
        %1273 = vmatpush1.bf16.msra.mxu0 %v1240
        %1274 = vmatprep.subr.bf16.mxu0 0
        %1275 = vmatpush2.bf16.msra.mxu0 0
        %1276 = vmatprep.subr.bf16.mxu0 0
        %1277 = vmatpush2.bf16.msra.mxu0 0
        %1278 = vmatprep.subr.bf16.mxu0 0
        %1279 = vmatpush2.bf16.msra.mxu0 0
        %1280 = vmatprep.subr.bf16.mxu0 0
        %1281 = vmatpush2.bf16.msra.mxu0 0
        %1282 = vmatprep.subr.bf16.mxu0 0
        %1283 = vmatpush2.bf16.msra.mxu0 0
        %1284 = vmatprep.subr.bf16.mxu0 0
        %1285 = vmatpush2.bf16.msra.mxu0 0
        %1286 = vmatprep.subr.bf16.mxu0 0
        %1287 = vmatpush2.bf16.msra.mxu0 0
        %1288 = vmatprep.subr.bf16.mxu0 0
        %1289 = vmatpush2.bf16.msra.mxu0 0
        %1290 = vmatprep.mubr.bf16.mxu0 0
        %1291 = vmatmul.mubr.bf16.gmra.mxu0 %v1244
        %v1292 = vpop.f32.mrf.mxu0
        %v1293 = vadd.f32 %v1204, %v1292
        %v1294 = vpop.f32.mrf.mxu0
        %v1295 = vpop.f32.mrf.mxu0
        %v1296 = vadd.f32 %v1207, %v1295
        %v1297 = vpop.f32.mrf.mxu0
        %1298 = vmatprep.mubr.bf16.mxu0 0
        %1299 = vmatmul.mubr.bf16.gmra.mxu0 %v1247
        %v1300 = vpop.f32.mrf.mxu0
        %v1301 = vadd.f32 %v1212, %v1300
        %v1302 = vpop.f32.mrf.mxu0
        %v1303 = vpop.f32.mrf.mxu0
        %v1304 = vadd.f32 %v1215, %v1303
        %v1305 = vpop.f32.mrf.mxu0
        %1306 = vmatprep.mubr.bf16.mxu0 0
        %1307 = vmatmul.mubr.bf16.gmra.mxu0 %v1250
        %v1308 = vpop.f32.mrf.mxu0
        %v1309 = vadd.f32 %v1220, %v1308
        %v1310 = vpop.f32.mrf.mxu0
        %v1311 = vpop.f32.mrf.mxu0
        %v1312 = vadd.f32 %v1223, %v1311
        %v1313 = vpop.f32.mrf.mxu0
        %1314 = vmatprep.mubr.bf16.mxu0 0
        %1315 = vmatmul.mubr.bf16.gmra.mxu0 %v1253
        %v1316 = vpop.f32.mrf.mxu0
        %v1317 = vadd.f32 %v1228, %v1316
        %v1318 = vpop.f32.mrf.mxu0
        %v1319 = vpop.f32.mrf.mxu0
        %v1320 = vadd.f32 %v1231, %v1319
        %v1321 = vpop.f32.mrf.mxu0
        %1322 = vdwg.mxu0
        %1323 = vrot.lane.b32.xlu0 %v537, 80
        %v1324 = vpop.permute.xlu0 %1323
        %1325 = vrot.lane.b32.xlu0 %v540, 80
        %v1326 = vpop.permute.xlu0 %1325
        %1327 = vrot.lane.b32.xlu0 %v543, 80
        %v1328 = vpop.permute.xlu0 %1327
        %1329 = vrot.lane.b32.xlu0 %v546, 80
        %v1330 = vpop.permute.xlu0 %1329
        %1331 = vrot.lane.b32.xlu0 %v538, 112
        %v1332 = vpop.permute.xlu0 %1331
        %1333 = vrot.lane.b32.xlu0 %v541, 112
        %v1334 = vpop.permute.xlu0 %1333
        %1335 = vrot.lane.b32.xlu0 %v544, 112
        %v1336 = vpop.permute.xlu0 %1335
        %1337 = vrot.lane.b32.xlu0 %v547, 112
        %v1338 = vpop.permute.xlu0 %1337
        %v1340 = vsel %vm561, %v1324, 0
        %v1343 = vsel %vm561, %v1326, 0
        %v1346 = vsel %vm561, %v1328, 0
        %v1349 = vsel %vm561, %v1330, 0
        %v1352 = vsel %vm561, %v1332, 0
        %v1355 = vsel %vm561, %v1334, 0
        %v1358 = vsel %vm561, %v1336, 0
        %v1361 = vsel %vm561, %v1338, 0
        %1363 = vmatprep.subr.bf16.mxu0 0
        %1364 = vmatpush1.bf16.xpose.msra.mxu0 0
        %1365 = vmatprep.subr.bf16.mxu0 0
        %1366 = vmatpush1.bf16.xpose.msra.mxu0 0
        %1367 = vmatprep.subr.bf16.mxu0 0
        %1368 = vmatpush1.bf16.xpose.msra.mxu0 0
        %1369 = vmatprep.subr.bf16.mxu0 0
        %1370 = vmatpush1.bf16.xpose.msra.mxu0 0
        %1371 = vmatprep.subr.bf16.mxu0 0
        %1372 = vmatpush1.bf16.xpose.msra.mxu0 %v1361
        %1373 = vmatprep.subr.bf16.mxu0 0
        %1374 = vmatpush1.bf16.xpose.msra.mxu0 %v1358
        %1375 = vmatprep.subr.bf16.mxu0 0
        %1376 = vmatpush1.bf16.xpose.msra.mxu0 %v1355
        %1377 = vmatprep.subr.bf16.mxu0 0
        %1378 = vmatpush1.bf16.xpose.msra.mxu0 %v1352
        %1379 = vmatprep.subr.bf16.mxu0 0
        %1380 = vmatpush2.bf16.xpose.msra.mxu0 0
        %1381 = vmatprep.subr.bf16.mxu0 0
        %1382 = vmatpush2.bf16.xpose.msra.mxu0 0
        %1383 = vmatprep.subr.bf16.mxu0 0
        %1384 = vmatpush2.bf16.xpose.msra.mxu0 0
        %1385 = vmatprep.subr.bf16.mxu0 0
        %1386 = vmatpush2.bf16.xpose.msra.mxu0 0
        %1387 = vmatprep.subr.bf16.mxu0 0
        %1388 = vmatpush2.bf16.xpose.msra.mxu0 0
        %1389 = vmatprep.subr.bf16.mxu0 0
        %1390 = vmatpush2.bf16.xpose.msra.mxu0 0
        %1391 = vmatprep.subr.bf16.mxu0 0
        %1392 = vmatpush2.bf16.xpose.msra.mxu0 0
        %1393 = vmatprep.subr.bf16.mxu0 0
        %1394 = vmatpush2.bf16.xpose.msra.mxu0 0
        %1395 = vmatprep.mubr.bf16.mxu0 0
        %1396 = vmatmul.mubr.bf16.gmra.mxu0 %v1340
        %v1397 = vpop.f32.mrf.mxu0
        %v1398 = vadd.f32 0.0, %v1397
        %v1399 = vpop.f32.mrf.mxu0
        %v1400 = vpop.f32.mrf.mxu0
        %v1401 = vadd.f32 0.0, %v1400
        %v1402 = vpop.f32.mrf.mxu0
        %1403 = vmatprep.mubr.bf16.mxu0 0
        %1404 = vmatmul.mubr.bf16.gmra.mxu0 %v1343
        %v1405 = vpop.f32.mrf.mxu0
        %v1406 = vadd.f32 0.0, %v1405
        %v1407 = vpop.f32.mrf.mxu0
        %v1408 = vpop.f32.mrf.mxu0
        %v1409 = vadd.f32 0.0, %v1408
        %v1410 = vpop.f32.mrf.mxu0
        %1411 = vmatprep.mubr.bf16.mxu0 0
        %1412 = vmatmul.mubr.bf16.gmra.mxu0 %v1346
        %v1413 = vpop.f32.mrf.mxu0
        %v1414 = vadd.f32 0.0, %v1413
        %v1415 = vpop.f32.mrf.mxu0
        %v1416 = vpop.f32.mrf.mxu0
        %v1417 = vadd.f32 0.0, %v1416
        %v1418 = vpop.f32.mrf.mxu0
        %1419 = vmatprep.mubr.bf16.mxu0 0
        %1420 = vmatmul.mubr.bf16.gmra.mxu0 %v1349
        %v1421 = vpop.f32.mrf.mxu0
        %v1422 = vadd.f32 0.0, %v1421
        %v1423 = vpop.f32.mrf.mxu0
        %v1424 = vpop.f32.mrf.mxu0
        %v1425 = vadd.f32 0.0, %v1424
        %v1426 = vpop.f32.mrf.mxu0
        %1427 = vdwg.mxu0
        %v1428 = vsel %vm651, %v1398, -inf
        %1429 = vmax.xlane.f32.xlu0 %v1428
        %v1430 = vpop.xlane.xlu0 %1429
        %v1431 = vsel %vm651, %v1401, -inf
        %1432 = vmax.xlane.f32.xlu0 %v1431
        %v1433 = vpop.xlane.xlu0 %1432
        %v1434 = vsel %vm651, %v1406, -inf
        %1435 = vmax.xlane.f32.xlu0 %v1434
        %v1436 = vpop.xlane.xlu0 %1435
        %v1437 = vsel %vm651, %v1409, -inf
        %1438 = vmax.xlane.f32.xlu0 %v1437
        %v1439 = vpop.xlane.xlu0 %1438
        %v1440 = vsel %vm651, %v1414, -inf
        %1441 = vmax.xlane.f32.xlu0 %v1440
        %v1442 = vpop.xlane.xlu0 %1441
        %v1443 = vsel %vm651, %v1417, -inf
        %1444 = vmax.xlane.f32.xlu0 %v1443
        %v1445 = vpop.xlane.xlu0 %1444
        %v1446 = vsel %vm651, %v1422, -inf
        %1447 = vmax.xlane.f32.xlu0 %v1446
        %v1448 = vpop.xlane.xlu0 %1447
        %v1449 = vsel %vm651, %v1425, -inf
        %1450 = vmax.xlane.f32.xlu0 %v1449
        %v1451 = vpop.xlane.xlu0 %1450
        %v1452 = vsub.f32 %v1398, %v1430
        %v1453 = vsub.f32 %v1401, %v1433
        %v1454 = vsub.f32 %v1406, %v1436
        %v1455 = vsub.f32 %v1409, %v1439
        %v1456 = vsub.f32 %v1414, %v1442
        %v1457 = vsub.f32 %v1417, %v1445
        %v1458 = vsub.f32 %v1422, %v1448
        %v1459 = vsub.f32 %v1425, %v1451
        %v1460 = vmul.f32 %v1452, 1.442695
        %v1461 = vpow.pop %v1460
        %v1462 = vmul.f32 %v1453, 1.442695
        %v1463 = vpow.pop %v1462
        %v1464 = vmul.f32 %v1454, 1.442695
        %v1465 = vpow.pop %v1464
        %v1466 = vmul.f32 %v1455, 1.442695
        %v1467 = vpow.pop %v1466
        %v1468 = vmul.f32 %v1456, 1.442695
        %v1469 = vpow.pop %v1468
        %v1470 = vmul.f32 %v1457, 1.442695
        %v1471 = vpow.pop %v1470
        %v1472 = vmul.f32 %v1458, 1.442695
        %v1473 = vpow.pop %v1472
        %v1474 = vmul.f32 %v1459, 1.442695
        %v1475 = vpow.pop %v1474
        %v1476 = vsel %vm651, %v1461, 0.0
        %1477 = vadd.xlane.f32.xlu0 %v1476
        %v1478 = vpop.xlane.xlu0 %1477
        %v1479 = vsel %vm651, %v1463, 0.0
        %1480 = vadd.xlane.f32.xlu0 %v1479
        %v1481 = vpop.xlane.xlu0 %1480
        %v1482 = vsel %vm651, %v1465, 0.0
        %1483 = vadd.xlane.f32.xlu0 %v1482
        %v1484 = vpop.xlane.xlu0 %1483
        %v1485 = vsel %vm651, %v1467, 0.0
        %1486 = vadd.xlane.f32.xlu0 %v1485
        %v1487 = vpop.xlane.xlu0 %1486
        %v1488 = vsel %vm651, %v1469, 0.0
        %1489 = vadd.xlane.f32.xlu0 %v1488
        %v1490 = vpop.xlane.xlu0 %1489
        %v1491 = vsel %vm651, %v1471, 0.0
        %1492 = vadd.xlane.f32.xlu0 %v1491
        %v1493 = vpop.xlane.xlu0 %1492
        %v1494 = vsel %vm651, %v1473, 0.0
        %1495 = vadd.xlane.f32.xlu0 %v1494
        %v1496 = vpop.xlane.xlu0 %1495
        %v1497 = vsel %vm651, %v1475, 0.0
        %1498 = vadd.xlane.f32.xlu0 %v1497
        %v1499 = vpop.xlane.xlu0 %1498
        %v1500 = vpack.c.bf16 %v1463, %v1461
        %v1501 = vpack.c.bf16 %v1467, %v1465
        %v1502 = vpack.c.bf16 %v1471, %v1469
        %v1503 = vpack.c.bf16 %v1475, %v1473
        %1508 = vrot.lane.b32.xlu0 %v538, 16
        %v1509 = vpop.permute.xlu0 %1508
        %1510 = vrot.lane.b32.xlu0 %v539, 16
        %v1511 = vpop.permute.xlu0 %1510
        %1512 = vrot.lane.b32.xlu0 %v541, 16
        %v1513 = vpop.permute.xlu0 %1512
        %1514 = vrot.lane.b32.xlu0 %v542, 16
        %v1515 = vpop.permute.xlu0 %1514
        %1516 = vrot.lane.b32.xlu0 %v544, 16
        %v1517 = vpop.permute.xlu0 %1516
        %1518 = vrot.lane.b32.xlu0 %v545, 16
        %v1519 = vpop.permute.xlu0 %1518
        %1520 = vrot.lane.b32.xlu0 %v547, 16
        %v1521 = vpop.permute.xlu0 %1520
        %1522 = vrot.lane.b32.xlu0 %v548, 16
        %v1523 = vpop.permute.xlu0 %1522
        %vm1524 = vcmask 130048
        %v1525 = vsel %vm1524, %v1509, %v1511
        %v1526 = vsel %vm1524, %v1513, %v1515
        %v1527 = vsel %vm1524, %v1517, %v1519
        %v1528 = vsel %vm1524, %v1521, %v1523
        %v1534 = vsel %vm651, %v1500, 0
        %v1537 = vsel %vm651, %v1501, 0
        %v1540 = vsel %vm651, %v1502, 0
        %v1543 = vsel %vm651, %v1503, 0
        %1545 = vmatprep.subr.bf16.mxu0 0
        %1546 = vmatpush1.bf16.msra.mxu0 0
        %1547 = vmatprep.subr.bf16.mxu0 0
        %1548 = vmatpush1.bf16.msra.mxu0 0
        %1549 = vmatprep.subr.bf16.mxu0 0
        %1550 = vmatpush1.bf16.msra.mxu0 0
        %1551 = vmatprep.subr.bf16.mxu0 0
        %1552 = vmatpush1.bf16.msra.mxu0 0
        %1553 = vmatprep.subr.bf16.mxu0 0
        %1554 = vmatpush1.bf16.msra.mxu0 %v1528
        %1555 = vmatprep.subr.bf16.mxu0 0
        %1556 = vmatpush1.bf16.msra.mxu0 %v1527
        %1557 = vmatprep.subr.bf16.mxu0 0
        %1558 = vmatpush1.bf16.msra.mxu0 %v1526
        %1559 = vmatprep.subr.bf16.mxu0 0
        %1560 = vmatpush1.bf16.msra.mxu0 %v1525
        %1561 = vmatprep.subr.bf16.mxu0 0
        %1562 = vmatpush2.bf16.msra.mxu0 0
        %1563 = vmatprep.subr.bf16.mxu0 0
        %1564 = vmatpush2.bf16.msra.mxu0 0
        %1565 = vmatprep.subr.bf16.mxu0 0
        %1566 = vmatpush2.bf16.msra.mxu0 0
        %1567 = vmatprep.subr.bf16.mxu0 0
        %1568 = vmatpush2.bf16.msra.mxu0 0
        %1569 = vmatprep.subr.bf16.mxu0 0
        %1570 = vmatpush2.bf16.msra.mxu0 0
        %1571 = vmatprep.subr.bf16.mxu0 0
        %1572 = vmatpush2.bf16.msra.mxu0 0
        %1573 = vmatprep.subr.bf16.mxu0 0
        %1574 = vmatpush2.bf16.msra.mxu0 0
        %1575 = vmatprep.subr.bf16.mxu0 0
        %1576 = vmatpush2.bf16.msra.mxu0 0
        %1577 = vmatprep.mubr.bf16.mxu0 0
        %1578 = vmatmul.mubr.bf16.gmra.mxu0 %v1534
        %v1579 = vpop.f32.mrf.mxu0
        %v1580 = vadd.f32 0.0, %v1579
        %v1581 = vpop.f32.mrf.mxu0
        %v1582 = vpop.f32.mrf.mxu0
        %v1583 = vadd.f32 0.0, %v1582
        %v1584 = vpop.f32.mrf.mxu0
        %1585 = vmatprep.mubr.bf16.mxu0 0
        %1586 = vmatmul.mubr.bf16.gmra.mxu0 %v1537
        %v1587 = vpop.f32.mrf.mxu0
        %v1588 = vadd.f32 0.0, %v1587
        %v1589 = vpop.f32.mrf.mxu0
        %v1590 = vpop.f32.mrf.mxu0
        %v1591 = vadd.f32 0.0, %v1590
        %v1592 = vpop.f32.mrf.mxu0
        %1593 = vmatprep.mubr.bf16.mxu0 0
        %1594 = vmatmul.mubr.bf16.gmra.mxu0 %v1540
        %v1595 = vpop.f32.mrf.mxu0
        %v1596 = vadd.f32 0.0, %v1595
        %v1597 = vpop.f32.mrf.mxu0
        %v1598 = vpop.f32.mrf.mxu0
        %v1599 = vadd.f32 0.0, %v1598
        %v1600 = vpop.f32.mrf.mxu0
        %1601 = vmatprep.mubr.bf16.mxu0 0
        %1602 = vmatmul.mubr.bf16.gmra.mxu0 %v1543
        %v1603 = vpop.f32.mrf.mxu0
        %v1604 = vadd.f32 0.0, %v1603
        %v1605 = vpop.f32.mrf.mxu0
        %v1606 = vpop.f32.mrf.mxu0
        %v1607 = vadd.f32 0.0, %v1606
        %v1608 = vpop.f32.mrf.mxu0
        %1609 = vdwg.mxu0
        %v1610 = vrcp.pop %v1478
        %v1611 = vrcp.pop %v1481
        %v1612 = vrcp.pop %v1484
        %v1613 = vrcp.pop %v1487
        %v1614 = vrcp.pop %v1490
        %v1615 = vrcp.pop %v1493
        %v1616 = vrcp.pop %v1496
        %v1617 = vrcp.pop %v1499
        %v1618 = vmul.f32 %v1580, %v1610
        %v1619 = vmul.f32 %v1583, %v1611
        %v1620 = vmul.f32 %v1588, %v1612
        %v1621 = vmul.f32 %v1591, %v1613
        %v1622 = vmul.f32 %v1596, %v1614
        %v1623 = vmul.f32 %v1599, %v1615
        %v1624 = vmul.f32 %v1604, %v1616
        %v1625 = vmul.f32 %v1607, %v1617
        %v1626 = vpack.c.bf16 %v1619, %v1618
        %v1627 = vpack.c.bf16 %v1621, %v1620
        %v1628 = vpack.c.bf16 %v1623, %v1622
        %v1629 = vpack.c.bf16 %v1625, %v1624
        %v1633 = vunpack.c.l.b16 %v267
        %v1634 = vunpack.c.l.b16 %v268
        %v1635 = vunpack.c.l.b16 %v269
        %v1636 = vpack.c.b16 %v1634, %v1633
        %v1637 = vpack.c.b16 %v1635, %v1635
        %v1640 = vsel %vm561, %v1626, 0
        %v1643 = vsel %vm561, %v1627, 0
        %v1646 = vsel %vm561, %v1628, 0
        %v1649 = vsel %vm561, %v1629, 0
        %v1652 = vsel %vm1165, %v1637, 0
        %1654 = vmatprep.subr.bf16.mxu0 0
        %1655 = vmatpush1.bf16.msra.mxu0 0
        %1656 = vmatprep.subr.bf16.mxu0 0
        %1657 = vmatpush1.bf16.msra.mxu0 0
        %1658 = vmatprep.subr.bf16.mxu0 0
        %1659 = vmatpush1.bf16.msra.mxu0 0
        %1660 = vmatprep.subr.bf16.mxu0 0
        %1661 = vmatpush1.bf16.msra.mxu0 0
        %1662 = vmatprep.subr.bf16.mxu0 0
        %1663 = vmatpush1.bf16.msra.mxu0 0
        %1664 = vmatprep.subr.bf16.mxu0 0
        %1665 = vmatpush1.bf16.msra.mxu0 0
        %1666 = vmatprep.subr.bf16.mxu0 0
        %1667 = vmatpush1.bf16.msra.mxu0 %v1652
        %1668 = vmatprep.subr.bf16.mxu0 0
        %1669 = vmatpush1.bf16.msra.mxu0 %v1636
        %1670 = vmatprep.subr.bf16.mxu0 0
        %1671 = vmatpush2.bf16.msra.mxu0 0
        %1672 = vmatprep.subr.bf16.mxu0 0
        %1673 = vmatpush2.bf16.msra.mxu0 0
        %1674 = vmatprep.subr.bf16.mxu0 0
        %1675 = vmatpush2.bf16.msra.mxu0 0
        %1676 = vmatprep.subr.bf16.mxu0 0
        %1677 = vmatpush2.bf16.msra.mxu0 0
        %1678 = vmatprep.subr.bf16.mxu0 0
        %1679 = vmatpush2.bf16.msra.mxu0 0
        %1680 = vmatprep.subr.bf16.mxu0 0
        %1681 = vmatpush2.bf16.msra.mxu0 0
        %1682 = vmatprep.subr.bf16.mxu0 0
        %1683 = vmatpush2.bf16.msra.mxu0 0
        %1684 = vmatprep.subr.bf16.mxu0 0
        %1685 = vmatpush2.bf16.msra.mxu0 0
        %1686 = vmatprep.mubr.bf16.mxu0 0
        %1687 = vmatmul.mubr.bf16.gmra.mxu0 %v1640
        %v1688 = vpop.f32.mrf.mxu0
        %v1689 = vadd.f32 0.0, %v1688
        %v1690 = vpop.f32.mrf.mxu0
        %v1691 = vpop.f32.mrf.mxu0
        %v1692 = vadd.f32 0.0, %v1691
        %v1693 = vpop.f32.mrf.mxu0
        %1694 = vmatprep.mubr.bf16.mxu0 0
        %1695 = vmatmul.mubr.bf16.gmra.mxu0 %v1643
        %v1696 = vpop.f32.mrf.mxu0
        %v1697 = vadd.f32 0.0, %v1696
        %v1698 = vpop.f32.mrf.mxu0
        %v1699 = vpop.f32.mrf.mxu0
        %v1700 = vadd.f32 0.0, %v1699
        %v1701 = vpop.f32.mrf.mxu0
        %1702 = vmatprep.mubr.bf16.mxu0 0
        %1703 = vmatmul.mubr.bf16.gmra.mxu0 %v1646
        %v1704 = vpop.f32.mrf.mxu0
        %v1705 = vadd.f32 0.0, %v1704
        %v1706 = vpop.f32.mrf.mxu0
        %v1707 = vpop.f32.mrf.mxu0
        %v1708 = vadd.f32 0.0, %v1707
        %v1709 = vpop.f32.mrf.mxu0
        %1710 = vmatprep.mubr.bf16.mxu0 0
        %1711 = vmatmul.mubr.bf16.gmra.mxu0 %v1649
        %v1712 = vpop.f32.mrf.mxu0
        %v1713 = vadd.f32 0.0, %v1712
        %v1714 = vpop.f32.mrf.mxu0
        %v1715 = vpop.f32.mrf.mxu0
        %v1716 = vadd.f32 0.0, %v1715
        %v1717 = vpop.f32.mrf.mxu0
        %1718 = vdwg.mxu0
        %v1719 = vadd.f32 %v1293, %v1689
        %v1720 = vadd.f32 %v1296, %v1692
        %v1721 = vadd.f32 %v1301, %v1697
        %v1722 = vadd.f32 %v1304, %v1700
        %v1723 = vadd.f32 %v1309, %v1705
        %v1724 = vadd.f32 %v1312, %v1708
        %v1725 = vadd.f32 %v1317, %v1713
        %v1726 = vadd.f32 %v1320, %v1716
        %1727 = vrot.lane.b32.xlu0 %v537, 56
        %v1728 = vpop.permute.xlu0 %1727
        %1729 = vrot.lane.b32.xlu0 %v540, 56
        %v1730 = vpop.permute.xlu0 %1729
        %1731 = vrot.lane.b32.xlu0 %v543, 56
        %v1732 = vpop.permute.xlu0 %1731
        %1733 = vrot.lane.b32.xlu0 %v546, 56
        %v1734 = vpop.permute.xlu0 %1733
        %1735 = vrot.lane.b32.xlu0 %v538, 88
        %v1736 = vpop.permute.xlu0 %1735
        %1737 = vrot.lane.b32.xlu0 %v541, 88
        %v1738 = vpop.permute.xlu0 %1737
        %1739 = vrot.lane.b32.xlu0 %v544, 88
        %v1740 = vpop.permute.xlu0 %1739
        %1741 = vrot.lane.b32.xlu0 %v547, 88
        %v1742 = vpop.permute.xlu0 %1741
        %v1744 = vsel %vm561, %v1728, 0
        %v1747 = vsel %vm561, %v1730, 0
        %v1750 = vsel %vm561, %v1732, 0
        %v1753 = vsel %vm561, %v1734, 0
        %v1756 = vsel %vm561, %v1736, 0
        %v1759 = vsel %vm561, %v1738, 0
        %v1762 = vsel %vm561, %v1740, 0
        %v1765 = vsel %vm561, %v1742, 0
        %1767 = vmatprep.subr.bf16.mxu0 0
        %1768 = vmatpush1.bf16.xpose.msra.mxu0 0
        %1769 = vmatprep.subr.bf16.mxu0 0
        %1770 = vmatpush1.bf16.xpose.msra.mxu0 0
        %1771 = vmatprep.subr.bf16.mxu0 0
        %1772 = vmatpush1.bf16.xpose.msra.mxu0 0
        %1773 = vmatprep.subr.bf16.mxu0 0
        %1774 = vmatpush1.bf16.xpose.msra.mxu0 0
        %1775 = vmatprep.subr.bf16.mxu0 0
        %1776 = vmatpush1.bf16.xpose.msra.mxu0 %v1765
        %1777 = vmatprep.subr.bf16.mxu0 0
        %1778 = vmatpush1.bf16.xpose.msra.mxu0 %v1762
        %1779 = vmatprep.subr.bf16.mxu0 0
        %1780 = vmatpush1.bf16.xpose.msra.mxu0 %v1759
        %1781 = vmatprep.subr.bf16.mxu0 0
        %1782 = vmatpush1.bf16.xpose.msra.mxu0 %v1756
        %1783 = vmatprep.subr.bf16.mxu0 0
        %1784 = vmatpush2.bf16.xpose.msra.mxu0 0
        %1785 = vmatprep.subr.bf16.mxu0 0
        %1786 = vmatpush2.bf16.xpose.msra.mxu0 0
        %1787 = vmatprep.subr.bf16.mxu0 0
        %1788 = vmatpush2.bf16.xpose.msra.mxu0 0
        %1789 = vmatprep.subr.bf16.mxu0 0
        %1790 = vmatpush2.bf16.xpose.msra.mxu0 0
        %1791 = vmatprep.subr.bf16.mxu0 0
        %1792 = vmatpush2.bf16.xpose.msra.mxu0 0
        %1793 = vmatprep.subr.bf16.mxu0 0
        %1794 = vmatpush2.bf16.xpose.msra.mxu0 0
        %1795 = vmatprep.subr.bf16.mxu0 0
        %1796 = vmatpush2.bf16.xpose.msra.mxu0 0
        %1797 = vmatprep.subr.bf16.mxu0 0
        %1798 = vmatpush2.bf16.xpose.msra.mxu0 0
        %1799 = vmatprep.mubr.bf16.mxu0 0
        %1800 = vmatmul.mubr.bf16.gmra.mxu0 %v1744
        %v1801 = vpop.f32.mrf.mxu0
        %v1802 = vadd.f32 0.0, %v1801
        %v1803 = vpop.f32.mrf.mxu0
        %v1804 = vpop.f32.mrf.mxu0
        %v1805 = vadd.f32 0.0, %v1804
        %v1806 = vpop.f32.mrf.mxu0
        %1807 = vmatprep.mubr.bf16.mxu0 0
        %1808 = vmatmul.mubr.bf16.gmra.mxu0 %v1747
        %v1809 = vpop.f32.mrf.mxu0
        %v1810 = vadd.f32 0.0, %v1809
        %v1811 = vpop.f32.mrf.mxu0
        %v1812 = vpop.f32.mrf.mxu0
        %v1813 = vadd.f32 0.0, %v1812
        %v1814 = vpop.f32.mrf.mxu0
        %1815 = vmatprep.mubr.bf16.mxu0 0
        %1816 = vmatmul.mubr.bf16.gmra.mxu0 %v1750
        %v1817 = vpop.f32.mrf.mxu0
        %v1818 = vadd.f32 0.0, %v1817
        %v1819 = vpop.f32.mrf.mxu0
        %v1820 = vpop.f32.mrf.mxu0
        %v1821 = vadd.f32 0.0, %v1820
        %v1822 = vpop.f32.mrf.mxu0
        %1823 = vmatprep.mubr.bf16.mxu0 0
        %1824 = vmatmul.mubr.bf16.gmra.mxu0 %v1753
        %v1825 = vpop.f32.mrf.mxu0
        %v1826 = vadd.f32 0.0, %v1825
        %v1827 = vpop.f32.mrf.mxu0
        %v1828 = vpop.f32.mrf.mxu0
        %v1829 = vadd.f32 0.0, %v1828
        %v1830 = vpop.f32.mrf.mxu0
        %1831 = vdwg.mxu0
        %v1832 = vsel %vm651, %v1802, -inf
        %1833 = vmax.xlane.f32.xlu0 %v1832
        %v1834 = vpop.xlane.xlu0 %1833
        %v1835 = vsel %vm651, %v1805, -inf
        %1836 = vmax.xlane.f32.xlu0 %v1835
        %v1837 = vpop.xlane.xlu0 %1836
        %v1838 = vsel %vm651, %v1810, -inf
        %1839 = vmax.xlane.f32.xlu0 %v1838
        %v1840 = vpop.xlane.xlu0 %1839
        %v1841 = vsel %vm651, %v1813, -inf
        %1842 = vmax.xlane.f32.xlu0 %v1841
        %v1843 = vpop.xlane.xlu0 %1842
        %v1844 = vsel %vm651, %v1818, -inf
        %1845 = vmax.xlane.f32.xlu0 %v1844
        %v1846 = vpop.xlane.xlu0 %1845
        %v1847 = vsel %vm651, %v1821, -inf
        %1848 = vmax.xlane.f32.xlu0 %v1847
        %v1849 = vpop.xlane.xlu0 %1848
        %v1850 = vsel %vm651, %v1826, -inf
        %1851 = vmax.xlane.f32.xlu0 %v1850
        %v1852 = vpop.xlane.xlu0 %1851
        %v1853 = vsel %vm651, %v1829, -inf
        %1854 = vmax.xlane.f32.xlu0 %v1853
        %v1855 = vpop.xlane.xlu0 %1854
        %v1856 = vsub.f32 %v1802, %v1834
        %v1857 = vsub.f32 %v1805, %v1837
        %v1858 = vsub.f32 %v1810, %v1840
        %v1859 = vsub.f32 %v1813, %v1843
        %v1860 = vsub.f32 %v1818, %v1846
        %v1861 = vsub.f32 %v1821, %v1849
        %v1862 = vsub.f32 %v1826, %v1852
        %v1863 = vsub.f32 %v1829, %v1855
        %v1864 = vmul.f32 %v1856, 1.442695
        %v1865 = vpow.pop %v1864
        %v1866 = vmul.f32 %v1857, 1.442695
        %v1867 = vpow.pop %v1866
        %v1868 = vmul.f32 %v1858, 1.442695
        %v1869 = vpow.pop %v1868
        %v1870 = vmul.f32 %v1859, 1.442695
        %v1871 = vpow.pop %v1870
        %v1872 = vmul.f32 %v1860, 1.442695
        %v1873 = vpow.pop %v1872
        %v1874 = vmul.f32 %v1861, 1.442695
        %v1875 = vpow.pop %v1874
        %v1876 = vmul.f32 %v1862, 1.442695
        %v1877 = vpow.pop %v1876
        %v1878 = vmul.f32 %v1863, 1.442695
        %v1879 = vpow.pop %v1878
        %v1880 = vsel %vm651, %v1865, 0.0
        %1881 = vadd.xlane.f32.xlu0 %v1880
        %v1882 = vpop.xlane.xlu0 %1881
        %v1883 = vsel %vm651, %v1867, 0.0
        %1884 = vadd.xlane.f32.xlu0 %v1883
        %v1885 = vpop.xlane.xlu0 %1884
        %v1886 = vsel %vm651, %v1869, 0.0
        %1887 = vadd.xlane.f32.xlu0 %v1886
        %v1888 = vpop.xlane.xlu0 %1887
        %v1889 = vsel %vm651, %v1871, 0.0
        %1890 = vadd.xlane.f32.xlu0 %v1889
        %v1891 = vpop.xlane.xlu0 %1890
        %v1892 = vsel %vm651, %v1873, 0.0
        %1893 = vadd.xlane.f32.xlu0 %v1892
        %v1894 = vpop.xlane.xlu0 %1893
        %v1895 = vsel %vm651, %v1875, 0.0
        %1896 = vadd.xlane.f32.xlu0 %v1895
        %v1897 = vpop.xlane.xlu0 %1896
        %v1898 = vsel %vm651, %v1877, 0.0
        %1899 = vadd.xlane.f32.xlu0 %v1898
        %v1900 = vpop.xlane.xlu0 %1899
        %v1901 = vsel %vm651, %v1879, 0.0
        %1902 = vadd.xlane.f32.xlu0 %v1901
        %v1903 = vpop.xlane.xlu0 %1902
        %v1904 = vpack.c.bf16 %v1867, %v1865
        %v1905 = vpack.c.bf16 %v1871, %v1869
        %v1906 = vpack.c.bf16 %v1875, %v1873
        %v1907 = vpack.c.bf16 %v1879, %v1877
        %1908 = vrot.lane.b32.xlu0 %v539, 120
        %v1909 = vpop.permute.xlu0 %1908
        %1910 = vrot.lane.b32.xlu0 %v542, 120
        %v1911 = vpop.permute.xlu0 %1910
        %1912 = vrot.lane.b32.xlu0 %v545, 120
        %v1913 = vpop.permute.xlu0 %1912
        %1914 = vrot.lane.b32.xlu0 %v548, 120
        %v1915 = vpop.permute.xlu0 %1914
        %v1921 = vsel %vm651, %v1904, 0
        %v1924 = vsel %vm651, %v1905, 0
        %v1927 = vsel %vm651, %v1906, 0
        %v1930 = vsel %vm651, %v1907, 0
        %1932 = vmatprep.subr.bf16.mxu0 0
        %1933 = vmatpush1.bf16.msra.mxu0 0
        %1934 = vmatprep.subr.bf16.mxu0 0
        %1935 = vmatpush1.bf16.msra.mxu0 0
        %1936 = vmatprep.subr.bf16.mxu0 0
        %1937 = vmatpush1.bf16.msra.mxu0 0
        %1938 = vmatprep.subr.bf16.mxu0 0
        %1939 = vmatpush1.bf16.msra.mxu0 0
        %1940 = vmatprep.subr.bf16.mxu0 0
        %1941 = vmatpush1.bf16.msra.mxu0 %v1915
        %1942 = vmatprep.subr.bf16.mxu0 0
        %1943 = vmatpush1.bf16.msra.mxu0 %v1913
        %1944 = vmatprep.subr.bf16.mxu0 0
        %1945 = vmatpush1.bf16.msra.mxu0 %v1911
        %1946 = vmatprep.subr.bf16.mxu0 0
        %1947 = vmatpush1.bf16.msra.mxu0 %v1909
        %1948 = vmatprep.subr.bf16.mxu0 0
        %1949 = vmatpush2.bf16.msra.mxu0 0
        %1950 = vmatprep.subr.bf16.mxu0 0
        %1951 = vmatpush2.bf16.msra.mxu0 0
        %1952 = vmatprep.subr.bf16.mxu0 0
        %1953 = vmatpush2.bf16.msra.mxu0 0
        %1954 = vmatprep.subr.bf16.mxu0 0
        %1955 = vmatpush2.bf16.msra.mxu0 0
        %1956 = vmatprep.subr.bf16.mxu0 0
        %1957 = vmatpush2.bf16.msra.mxu0 0
        %1958 = vmatprep.subr.bf16.mxu0 0
        %1959 = vmatpush2.bf16.msra.mxu0 0
        %1960 = vmatprep.subr.bf16.mxu0 0
        %1961 = vmatpush2.bf16.msra.mxu0 0
        %1962 = vmatprep.subr.bf16.mxu0 0
        %1963 = vmatpush2.bf16.msra.mxu0 0
        %1964 = vmatprep.mubr.bf16.mxu0 0
        %1965 = vmatmul.mubr.bf16.gmra.mxu0 %v1921
        %v1966 = vpop.f32.mrf.mxu0
        %v1967 = vadd.f32 0.0, %v1966
        %v1968 = vpop.f32.mrf.mxu0
        %v1969 = vpop.f32.mrf.mxu0
        %v1970 = vadd.f32 0.0, %v1969
        %v1971 = vpop.f32.mrf.mxu0
        %1972 = vmatprep.mubr.bf16.mxu0 0
        %1973 = vmatmul.mubr.bf16.gmra.mxu0 %v1924
        %v1974 = vpop.f32.mrf.mxu0
        %v1975 = vadd.f32 0.0, %v1974
        %v1976 = vpop.f32.mrf.mxu0
        %v1977 = vpop.f32.mrf.mxu0
        %v1978 = vadd.f32 0.0, %v1977
        %v1979 = vpop.f32.mrf.mxu0
        %1980 = vmatprep.mubr.bf16.mxu0 0
        %1981 = vmatmul.mubr.bf16.gmra.mxu0 %v1927
        %v1982 = vpop.f32.mrf.mxu0
        %v1983 = vadd.f32 0.0, %v1982
        %v1984 = vpop.f32.mrf.mxu0
        %v1985 = vpop.f32.mrf.mxu0
        %v1986 = vadd.f32 0.0, %v1985
        %v1987 = vpop.f32.mrf.mxu0
        %1988 = vmatprep.mubr.bf16.mxu0 0
        %1989 = vmatmul.mubr.bf16.gmra.mxu0 %v1930
        %v1990 = vpop.f32.mrf.mxu0
        %v1991 = vadd.f32 0.0, %v1990
        %v1992 = vpop.f32.mrf.mxu0
        %v1993 = vpop.f32.mrf.mxu0
        %v1994 = vadd.f32 0.0, %v1993
        %v1995 = vpop.f32.mrf.mxu0
        %1996 = vdwg.mxu0
        %v1997 = vrcp.pop %v1882
        %v1998 = vrcp.pop %v1885
        %v1999 = vrcp.pop %v1888
        %v2000 = vrcp.pop %v1891
        %v2001 = vrcp.pop %v1894
        %v2002 = vrcp.pop %v1897
        %v2003 = vrcp.pop %v1900
        %v2004 = vrcp.pop %v1903
        %v2005 = vmul.f32 %v1967, %v1997
        %v2006 = vmul.f32 %v1970, %v1998
        %v2007 = vmul.f32 %v1975, %v1999
        %v2008 = vmul.f32 %v1978, %v2000
        %v2009 = vmul.f32 %v1983, %v2001
        %v2010 = vmul.f32 %v1986, %v2002
        %v2011 = vmul.f32 %v1991, %v2003
        %v2012 = vmul.f32 %v1994, %v2004
        %v2013 = vpack.c.bf16 %v2006, %v2005
        %v2014 = vpack.c.bf16 %v2008, %v2007
        %v2015 = vpack.c.bf16 %v2010, %v2009
        %v2016 = vpack.c.bf16 %v2012, %v2011
        %v2020 = vunpack.c.l.b16 %v270
        %v2021 = vunpack.c.l.b16 %v271
        %v2022 = vunpack.c.l.b16 %v272
        %v2023 = vpack.c.b16 %v2021, %v2020
        %v2024 = vpack.c.b16 %v2022, %v2022
        %v2027 = vsel %vm561, %v2013, 0
        %v2030 = vsel %vm561, %v2014, 0
        %v2033 = vsel %vm561, %v2015, 0
        %v2036 = vsel %vm561, %v2016, 0
        %v2039 = vsel %vm1165, %v2024, 0
        %2041 = vmatprep.subr.bf16.mxu0 0
        %2042 = vmatpush1.bf16.msra.mxu0 0
        %2043 = vmatprep.subr.bf16.mxu0 0
        %2044 = vmatpush1.bf16.msra.mxu0 0
        %2045 = vmatprep.subr.bf16.mxu0 0
        %2046 = vmatpush1.bf16.msra.mxu0 0
        %2047 = vmatprep.subr.bf16.mxu0 0
        %2048 = vmatpush1.bf16.msra.mxu0 0
        %2049 = vmatprep.subr.bf16.mxu0 0
        %2050 = vmatpush1.bf16.msra.mxu0 0
        %2051 = vmatprep.subr.bf16.mxu0 0
        %2052 = vmatpush1.bf16.msra.mxu0 0
        %2053 = vmatprep.subr.bf16.mxu0 0
        %2054 = vmatpush1.bf16.msra.mxu0 %v2039
        %2055 = vmatprep.subr.bf16.mxu0 0
        %2056 = vmatpush1.bf16.msra.mxu0 %v2023
        %2057 = vmatprep.subr.bf16.mxu0 0
        %2058 = vmatpush2.bf16.msra.mxu0 0
        %2059 = vmatprep.subr.bf16.mxu0 0
        %2060 = vmatpush2.bf16.msra.mxu0 0
        %2061 = vmatprep.subr.bf16.mxu0 0
        %2062 = vmatpush2.bf16.msra.mxu0 0
        %2063 = vmatprep.subr.bf16.mxu0 0
        %2064 = vmatpush2.bf16.msra.mxu0 0
        %2065 = vmatprep.subr.bf16.mxu0 0
        %2066 = vmatpush2.bf16.msra.mxu0 0
        %2067 = vmatprep.subr.bf16.mxu0 0
        %2068 = vmatpush2.bf16.msra.mxu0 0
        %2069 = vmatprep.subr.bf16.mxu0 0
        %2070 = vmatpush2.bf16.msra.mxu0 0
        %2071 = vmatprep.subr.bf16.mxu0 0
        %2072 = vmatpush2.bf16.msra.mxu0 0
        %2073 = vmatprep.mubr.bf16.mxu0 0
        %2074 = vmatmul.mubr.bf16.gmra.mxu0 %v2027
        %v2075 = vpop.f32.mrf.mxu0
        %v2076 = vadd.f32 0.0, %v2075
        %v2077 = vpop.f32.mrf.mxu0
        %v2078 = vpop.f32.mrf.mxu0
        %v2079 = vadd.f32 0.0, %v2078
        %v2080 = vpop.f32.mrf.mxu0
        %2081 = vmatprep.mubr.bf16.mxu0 0
        %2082 = vmatmul.mubr.bf16.gmra.mxu0 %v2030
        %v2083 = vpop.f32.mrf.mxu0
        %v2084 = vadd.f32 0.0, %v2083
        %v2085 = vpop.f32.mrf.mxu0
        %v2086 = vpop.f32.mrf.mxu0
        %v2087 = vadd.f32 0.0, %v2086
        %v2088 = vpop.f32.mrf.mxu0
        %2089 = vmatprep.mubr.bf16.mxu0 0
        %2090 = vmatmul.mubr.bf16.gmra.mxu0 %v2033
        %v2091 = vpop.f32.mrf.mxu0
        %v2092 = vadd.f32 0.0, %v2091
        %v2093 = vpop.f32.mrf.mxu0
        %v2094 = vpop.f32.mrf.mxu0
        %v2095 = vadd.f32 0.0, %v2094
        %v2096 = vpop.f32.mrf.mxu0
        %2097 = vmatprep.mubr.bf16.mxu0 0
        %2098 = vmatmul.mubr.bf16.gmra.mxu0 %v2036
        %v2099 = vpop.f32.mrf.mxu0
        %v2100 = vadd.f32 0.0, %v2099
        %v2101 = vpop.f32.mrf.mxu0
        %v2102 = vpop.f32.mrf.mxu0
        %v2103 = vadd.f32 0.0, %v2102
        %v2104 = vpop.f32.mrf.mxu0
        %2105 = vdwg.mxu0
        %v2106 = vadd.f32 %v1719, %v2076
        %v2107 = vadd.f32 %v1720, %v2079
        %v2108 = vadd.f32 %v1721, %v2084
        %v2109 = vadd.f32 %v1722, %v2087
        %v2110 = vadd.f32 %v1723, %v2092
        %v2111 = vadd.f32 %v1724, %v2095
        %v2112 = vadd.f32 %v1725, %v2100
        %v2113 = vadd.f32 %v1726, %v2103
        %v2115 = vlaneseq
        %v2116 = vshrl.u32 %v2115, 7
        %v2117 = vsub.s32 0, %v2116
        %v2118 = vrot.slane %v273, %v2117
        %v2120 = vadd.f32 %v2106, %v2118
        %v2121 = vadd.f32 %v2107, %v2118
        %v2122 = vadd.f32 %v2108, %v2118
        %v2123 = vadd.f32 %v2109, %v2118
        %v2124 = vadd.f32 %v2110, %v2118
        %v2125 = vadd.f32 %v2111, %v2118
        %v2126 = vadd.f32 %v2112, %v2118
        %v2127 = vadd.f32 %v2113, %v2118
        %2128 = vst.msk [vmem:[%s217] sm:$0xff] %vm386, %v2120
        %2129 = vst.msk [vmem:[%s217 + $0x8] sm:$0xff] %vm386, %v2121
        %2130 = vst.msk [vmem:[%s217 + $0x10] sm:$0xff] %vm386, %v2122
        %2131 = vst.msk [vmem:[%s217 + $0x18] sm:$0xff] %vm386, %v2123
        %2132 = vst.msk [vmem:[%s217 + $0x20] sm:$0xff] %vm386, %v2124
        %2133 = vst.msk [vmem:[%s217 + $0x28] sm:$0xff] %vm386, %v2125
        %2134 = vst.msk [vmem:[%s217 + $0x30] sm:$0xff] %vm386, %v2126
        %2135 = vst.msk [vmem:[%s217 + $0x38] sm:$0xff] %vm386, %v2127
        %s2136 = sand.u32 %s137, 1
        %s2137 = scalar_lea.sflag [#allocation3], %s2136
        %s2138 = sand.u32 %s137, 1
        %s2139 = smul.addr %s2138, 64
        %s2140 = scalar_lea.vmem [#allocation2], %s2139
        // Predicated region
        $region41: #{attention_forward.1} parent=39 // pred_check
          %p2141 = pneg %p147
        $region42: #{attention_forward.1} parent=39 // pred_check_branch
          %2143 = sbr.rel (%p2141) target = $region44
        $region43: #{attention_forward.1} parent=39 // pred_region
          %s2145 = ssub.s32 1024, 1024
          %2146 = vsyncadd %s2137, %s2145
          %s2147 = smul.addr %s19, 8
          %s2148 = smul.addr %s2147, 128
          %s2149 = scalar_lea.hbm %s5, %s2148
          %s2150 = sshll.u32 %s2140, 4
          %s2151 = int_to_ptr.vmem [resolvable:$true] %s2150
          %2156 = dma.vmem_to_hbm [thread:$0]  %s2151, 1024, %s2149, %s2137, 128, 128, 8
        $region44: #{attention_forward.1} parent=39 // pred_fallthru
          _
      $region40: #{attention_forward.1} parent=5 // pred_fallthru
        _
      %p2157 = scmp.le.s32.totalorder 2, %s14
      // Predicated region
      $region45: #{attention_forward.1} parent=5 // pred_check
        %p2158 = pneg %p2157
      $region46: #{attention_forward.1} parent=5 // pred_check_branch
        %2160 = sbr.rel (%p2158) target = $region48
      $region47: #{attention_forward.1} parent=5 // pred_region
        %s2161 = ssub.s32 %s14, 2
        // Predicated region
        $region49: #{attention_forward.1} parent=47 // pred_check
          %p2162 = pneg %p153
        $region50: #{attention_forward.1} parent=47 // pred_check_branch
          %2164 = sbr.rel (%p2162) target = $region52
        $region51: #{attention_forward.1} parent=47 // pred_region
          %s2165 = sand.u32 %s138, 1
          %s2166 = scalar_lea.sflag [#allocation3], %s2165
          %s2167 = sand.u32 %s138, 1
          %s2168 = smul.addr %s2167, 64
          %s2169 = scalar_lea.vmem [#allocation2], %s2168
          %2170 = dma.done %s2166, 1024
        $region52: #{attention_forward.1} parent=47 // pred_fallthru
          _
      $region48: #{attention_forward.1} parent=5 // pred_fallthru
        _
    $region6: #{attention_forward.1} parent=1 // loop_footer
      %s18 = sadd.s32 1, %s14
    $region7: #{attention_forward.1} parent=1 // loop_footer_branch
      %13 = sbr.rel target = $region3
    $region8: #{attention_forward.1} parent=1 // loop_exit
      _
    %2171 = vsyncpa [#allocation3], 1
    %s2172 = scalar_lea.sflag [#allocation3], 1
    %2173 = vsyncpa %s2172, 1

</llo_original>
